<compile_context>
chip_gen: v6e
topology: v6e:2x2x1
jax: 0.10.0
libtpu: 0.0.40
codegen_flags: <defaults>
</compile_context>

<pallas_src>
import math

import jax
import jax.numpy as jnp
from jax.experimental import pallas as pl
from jax.experimental.pallas import tpu as pltpu


# ------------------------------- helpers ------------------------------------

_LANE = 128
_SUBLANE_BF16 = 16            # bf16 packs 2 rows/sublane -> native (16, 128) tile


def _round_up(x, m):
    return ((x + m - 1) // m) * m


def _pad_dim(d):
    """Pad a layer width so tiled layers get MXU-friendly (256-multiple) tiles."""
    if d >= 1024:
        return _round_up(d, 512)          # 8000 -> 8192, 2667 -> 3072
    return _round_up(d, _LANE)


def _pick_tile(dim, cap):
    """Largest divisor of `dim` that is <= cap, preferring multiples of 256
    (v6e/v7x 256-deep MXU), falling back to multiples of 128 (v5e granularity)."""
    if dim <= cap:
        return dim
    for mult in (256, _LANE):
        start = (cap // mult) * mult
        for t in range(start, 0, -mult):
            if dim % t == 0:
                return t
    return _LANE                           # padded dims are always 128-multiples


def _vmem_budgets():
    """Generation-aware VMEM budgets (v5e/v6e: 128 MiB physical, v7x: 64 MiB)."""
    try:
        vmem = int(pltpu.get_tpu_info().vmem_capacity_bytes)
    except Exception:
        vmem = 64 * 1024 * 1024            # conservative (v7x-sized) fallback
    vmem_limit = int(vmem * 0.80)          # ~102 MiB v5e/v6e, ~51 MiB v7x
    fused_budget = int(vmem_limit * 0.70)  # weights + activations for fused path
    return fused_budget, vmem_limit


def _single_buffer_supported():
    try:
        pl.BlockSpec((8, _LANE), lambda i: (0, 0), pipeline_mode=pl.Buffered(1))
        return True
    except Exception:
        return False


_SINGLE_BUFFER_WEIGHTS = _single_buffer_supported()


def _const_spec(shape, single_buffer):
    """BlockSpec for a grid-invariant (VMEM-resident) operand."""
    index_map = lambda i: (0,) * len(shape)
    if single_buffer:
        # Constant block index across the batch grid: double-buffering buys
        # nothing but doubles resident weight VMEM -> single-buffer it.
        return pl.BlockSpec(shape, index_map, pipeline_mode=pl.Buffered(1))
    return pl.BlockSpec(shape, index_map)


def _choose_tb(b):
    """Batch tile: multiple of 16 (bf16 packing); >= 2 grid steps when possible
    (v7x second TensorCore); up to 512 rows to amortize weight streaming."""
    bp = _round_up(b, _SUBLANE_BF16)
    if bp <= _SUBLANE_BF16:
        return bp, bp
    if bp <= 1024:
        tb = _round_up((bp + 1) // 2, _SUBLANE_BF16)
        return tb, 2 * tb
    tb = 512
    return tb, _round_up(bp, tb)


# --------------------------- fused chain kernel ------------------------------

def _make_fused_kernel(n_layers):
    """One kernel computing a Linear+ReLU chain; activations stay on-chip."""

    def kernel(*refs):
        # refs = (x, w0, b0, w1, b1, ..., o)
        x_ref = refs[0]
        o_ref = refs[1 + 2 * n_layers]
        h = x_ref[...]                                        # bf16 (tb, D0p)
        for li in range(n_layers):
            w_ref = refs[1 + 2 * li]                          # bf16 (Dinp, Doutp)
            b_ref = refs[2 + 2 * li]                          # f32  (1, Doutp)
            y = jnp.dot(h, w_ref[...], preferred_element_type=jnp.float32)
            y = jnp.maximum(y + b_ref[...], 0.0)              # f32 bias + ReLU
            if li == n_layers - 1:
                o_ref[...] = y.astype(o_ref.dtype)
            else:
                h = y.astype(jnp.bfloat16)

    return kernel


def _fused_chain(x, params, tb, out_dtype, single_buffer_weights):
    """Single pallas_call for a chain of Linear+ReLU layers (weights resident)."""
    bp, d0p = x.shape
    n_layers = len(params)
    dlp = params[-1][0].shape[1]

    in_specs = [pl.BlockSpec((tb, d0p), lambda i: (i, 0))]
    flat_args = [x]
    flops = 0
    bytes_accessed = (x.size * x.dtype.itemsize
                      + bp * dlp * jnp.dtype(out_dtype).itemsize)
    for w, b in params:
        dinp, doutp = w.shape
        in_specs.append(_const_spec((dinp, doutp), single_buffer_weights))
        in_specs.append(_const_spec((1, doutp), single_buffer_weights))
        flat_args += [w, b]
        flops += 2 * bp * dinp * doutp
        bytes_accessed += w.size * 2 + b.size * 4

    _, vmem_limit = _vmem_budgets()
    return pl.pallas_call(
        _make_fused_kernel(n_layers),
        out_shape=jax.ShapeDtypeStruct((bp, dlp), out_dtype),
        grid=(bp // tb,),
        in_specs=in_specs,
        out_specs=pl.BlockSpec((tb, dlp), lambda i: (i, 0)),
        compiler_params=pltpu.CompilerParams(
            dimension_semantics=("parallel",),
            vmem_limit_bytes=vmem_limit),
        cost_estimate=pl.CostEstimate(
            flops=flops, transcendentals=0, bytes_accessed=bytes_accessed),
    )(*flat_args)


def _run_fused_segment(x, params, tb, out_dtype):
    if _SINGLE_BUFFER_WEIGHTS:
        try:
            return _fused_chain(x, params, tb, out_dtype, True)
        except Exception:
            pass   # Buffered(1) rejected at lowering -> default double-buffering.
    return _fused_chain(x, params, tb, out_dtype, False)


# ---------------------- tiled per-layer fallback kernel ----------------------

def _tiled_linear_relu_kernel(x_ref, w_ref, b_ref, o_ref, acc_ref):
    k = pl.program_id(2)

    @pl.when(k == 0)
    def _():
        acc_ref[...] = jnp.zeros_like(acc_ref)

    acc_ref[...] += jnp.dot(x_ref[...], w_ref[...],
                            preferred_element_type=jnp.float32)

    @pl.when(k == pl.num_programs(2) - 1)
    def _():
        o_ref[...] = jnp.maximum(acc_ref[...] + b_ref[...], 0.0).astype(o_ref.dtype)


def _tiled_linear_relu(x, w, b, *, out_dtype, tb):
    bp, dinp = x.shape
    _, doutp = w.shape
    tn = _pick_tile(doutp, 512)     # lane-dense N, multiple of 256 where possible
    tk = _pick_tile(dinp, 2048)     # big K tiles -> 1-2 MB weight DMAs per step
    grid = (bp // tb, doutp // tn, dinp // tk)    # K (reduction) innermost

    flops = 2 * bp * dinp * doutp
    bytes_accessed = (x.size * x.dtype.itemsize
                      + (bp // tb) * w.size * w.dtype.itemsize   # re-streamed per batch tile
                      + b.size * 4
                      + bp * doutp * jnp.dtype(out_dtype).itemsize)

    _, vmem_limit = _vmem_budgets()
    # TODO(synk): if a profile shows exposed weight DMA (e.g. v5e HBM bandwidth),
    # set pipeline_mode=pl.Buffered(3) on the w BlockSpec instead of shrinking tiles.
    return pl.pallas_call(
        _tiled_linear_relu_kernel,
        out_shape=jax.ShapeDtypeStruct((bp, doutp), out_dtype),
        grid=grid,
        in_specs=[
            pl.BlockSpec((tb, tk), lambda i, j, k: (i, k)),
            pl.BlockSpec((tk, tn), lambda i, j, k: (k, j)),
            pl.BlockSpec((1, tn), lambda i, j, k: (0, j)),
        ],
        out_specs=pl.BlockSpec((tb, tn), lambda i, j, k: (i, j)),
        scratch_shapes=[pltpu.VMEM((tb, tn), jnp.float32)],
        compiler_params=pltpu.CompilerParams(
            dimension_semantics=("parallel", "parallel", "arbitrary"),
            vmem_limit_bytes=vmem_limit),
        cost_estimate=pl.CostEstimate(
            flops=flops, transcendentals=0, bytes_accessed=bytes_accessed),
    )(x, w, b)


# --------------------------- module construction ----------------------------

def get_ae_dimensions(inp_dim, latent_space_dim):
    # Mirrors FineTuneChemicalDiceIntegrator.getAEDimensions
    ae_dim = []
    this_dim = inp_dim
    while this_dim > latent_space_dim:
        ae_dim += [this_dim]
        this_dim = math.ceil(this_dim / 3)
    return ae_dim + [latent_space_dim] + ae_dim[::-1]


def xavier_uniform(key, out_dim, in_dim):
    # Matches torch.nn.init.xavier_uniform_ (gain=1) on the (out, in) weight.
    bound = math.sqrt(6.0 / (in_dim + out_dim))
    return jax.random.uniform(key, (out_dim, in_dim), jnp.float32, -bound, bound)


def init_autoencoder_params(key, dims):
    """Autoencoder(dims): Linear(dims[i], dims[i+1]) + ReLU for every i.

    Frozen weights are pre-transposed to (Din, Dout), zero-padded to MXU-friendly
    widths (_pad_dim) and cast to bf16 ONCE here. Biases stay f32 (zero-init per
    the PyTorch module), padded to (1, Doutp).
    """
    padded_dims = [_pad_dim(d) for d in dims]
    params = []
    for i in range(len(dims) - 1):
        key, sub = jax.random.split(key)
        din, dout = dims[i], dims[i + 1]
        dinp, doutp = padded_dims[i], padded_dims[i + 1]
        w = xavier_uniform(sub, dout, din)                       # PyTorch (out, in)
        wt = jnp.transpose(w)                                    # (din, dout)
        wt = jnp.pad(wt, ((0, dinp - din), (0, doutp - dout)))   # zero pad
        params.append((wt.astype(jnp.bfloat16),
                       jnp.zeros((1, doutp), jnp.float32)))
    return params, padded_dims


# ------------------------------ layer planning -------------------------------

def _plan_segments(params, tb, force_tiled=False):
    """Group consecutive layers into ('fused', [idx...]) / ('tiled', [idx])."""
    if force_tiled:
        return [("tiled", [i]) for i in range(len(params))]
    fused_budget, _ = _vmem_budgets()
    w_mult = 1 if _SINGLE_BUFFER_WEIGHTS else 2

    def w_bytes(i):
        w, b = params[i]
        return w_mult * w.size * w.dtype.itemsize + 2 * b.size * b.dtype.itemsize

    def act_bytes(dmax):
        # double-buffered x/out blocks + live f32 intermediates (generous proxy)
        return 6 * tb * dmax * 4

    segments, cur, cur_w, cur_dmax = [], [], 0, 0
    for i, (w, _) in enumerate(params):
        wb = w_bytes(i)
        dmax = max(w.shape)
        fits_alone = wb + act_bytes(dmax) <= fused_budget
        fits_here = cur_w + wb + act_bytes(max(cur_dmax, dmax)) <= fused_budget
        if fits_alone and (not cur or fits_here):
            cur.append(i)
            cur_w += wb
            cur_dmax = max(cur_dmax, dmax)
        elif fits_alone:
            segments.append(("fused", cur))
            cur, cur_w, cur_dmax = [i], wb, dmax
        else:
            if cur:
                segments.append(("fused", cur))
                cur, cur_w, cur_dmax = [], 0, 0
            segments.append(("tiled", [i]))
    if cur:
        segments.append(("fused", cur))
    return segments


# --------------------------------- forward -----------------------------------

def finetune_chemical_dice_forward(cdi_output, params, padded_dims, *,
                                   force_tiled=False):
    """forward(x) of FineTuneChemicalDiceIntegrator (CDI embedding given as input).

    Returns (output, finetuner(output)) like the PyTorch module.
    """
    b, d0 = cdi_output.shape
    d0p = padded_dims[0]

    tb, bp = _choose_tb(b)
    # TODO(synk): bf16 activations/weights (f32 accumulate) is an intentional
    # accuracy/speed trade vs. the all-f32 PyTorch module; keep an f32 path if
    # bit-level parity with the frozen finetuner is required.
    x_pad = jnp.pad(cdi_output, ((0, bp - b), (0, d0p - d0))).astype(jnp.bfloat16)

    segments = _plan_segments(params, tb, force_tiled=force_tiled)

    h = x_pad
    n_layers = len(params)
    for kind, idxs in segments:
        seg_params = [params[i] for i in idxs]
        is_last = idxs[-1] == n_layers - 1
        out_dtype = jnp.float32 if is_last else jnp.bfloat16
        if kind == "fused":
            h = _run_fused_segment(h, seg_params, tb, out_dtype)
        else:
            h = _tiled_linear_relu(h, *seg_params[0], out_dtype=out_dtype, tb=tb)

    # dims are symmetric: dims[-1] == dims[0] == d0
    recon = h[:b, :d0]
    return cdi_output, recon


def _reference_forward(cdi_output, params, padded_dims):
    """Pure-JAX reference with the same bf16-weight / f32-accumulate recipe."""
    b, d0 = cdi_output.shape
    h = jnp.pad(cdi_output, ((0, 0), (0, padded_dims[0] - d0))).astype(jnp.bfloat16)
    y = None
    for w, bia in params:
        y = jnp.dot(h.astype(jnp.float32), w.astype(jnp.float32)) + bia
        y = jnp.maximum(y, 0.0)
        h = y.astype(jnp.bfloat16)
    return y[:b, :d0]


# ----------------------------------- main ------------------------------------

if __name__ == "__main__":
    # Small shapes consistent with the module: default_embed_dim -> user_embed_dim
    batch = 8
    default_embed_dim = 256     # CDI embedding width (small stand-in for 8000)
    user_embed_dim = 32         # latent width (small stand-in for 128)

    dims = get_ae_dimensions(default_embed_dim, user_embed_dim)
    # dims == [256, 86, 32, 86, 256]

    key = jax.random.PRNGKey(0)
    key, pkey, xkey = jax.random.split(key, 3)
    params, padded_dims = init_autoencoder_params(pkey, dims)

    # Stand-in for the frozen CDI's `output` embedding.
    cdi_output = jax.random.normal(xkey, (batch, default_embed_dim), jnp.float32)

    # Fused single-launch path (used at these shapes).
    out, recon = finetune_chemical_dice_forward(cdi_output, params, padded_dims)
    # Tiled per-layer path (used automatically for oversized production layers);
    # exercised here too so both kernels compile and agree.
    out_t, recon_t = finetune_chemical_dice_forward(
        cdi_output, params, padded_dims, force_tiled=True)
    jax.block_until_ready((out, recon, out_t, recon_t))

    ref = _reference_forward(cdi_output, params, padded_dims)

    assert out.shape == (batch, default_embed_dim)
    assert recon.shape == (batch, default_embed_dim)
    assert recon_t.shape == (batch, default_embed_dim)
    assert jnp.allclose(recon, ref, rtol=5e-3, atol=5e-3)
    assert jnp.allclose(recon_t, ref, rtol=5e-3, atol=5e-3)
    print("KERNEL_OK")
</pallas_src>

<mosaic_0001>
module attributes {stable_mosaic.version = 11 : i64} {
  func.func @kernel(%arg0: i32, %arg1: memref<16x256xbf16, #tpu.memory_space<vmem>>, %arg2: memref<256x128xbf16, #tpu.memory_space<vmem>>, %arg3: memref<1x128xf32, #tpu.memory_space<vmem>>, %arg4: memref<128x128xbf16, #tpu.memory_space<vmem>>, %arg5: memref<1x128xf32, #tpu.memory_space<vmem>>, %arg6: memref<128x128xbf16, #tpu.memory_space<vmem>>, %arg7: memref<1x128xf32, #tpu.memory_space<vmem>>, %arg8: memref<128x256xbf16, #tpu.memory_space<vmem>>, %arg9: memref<1x256xf32, #tpu.memory_space<vmem>>, %arg10: memref<16x256xf32, #tpu.memory_space<vmem>>) attributes {dimension_semantics = [#tpu.dimension_semantics<parallel>], iteration_bounds = array<i64: 1>, scalar_prefetch = 0 : i64, scratch_operands = 0 : i64, tpu.core_type = #tpu.core_type<tc>, window_params = [{transform_indices = @transform_0, window_bounds = array<i64: 16, 256>}, {pipeline_mode = #tpu.pipeline_mode<synchronous>, transform_indices = @transform_1, window_bounds = array<i64: 256, 128>}, {pipeline_mode = #tpu.pipeline_mode<synchronous>, transform_indices = @transform_2, window_bounds = array<i64: 1, 128>}, {pipeline_mode = #tpu.pipeline_mode<synchronous>, transform_indices = @transform_3, window_bounds = array<i64: 128, 128>}, {pipeline_mode = #tpu.pipeline_mode<synchronous>, transform_indices = @transform_4, window_bounds = array<i64: 1, 128>}, {pipeline_mode = #tpu.pipeline_mode<synchronous>, transform_indices = @transform_5, window_bounds = array<i64: 128, 128>}, {pipeline_mode = #tpu.pipeline_mode<synchronous>, transform_indices = @transform_6, window_bounds = array<i64: 1, 128>}, {pipeline_mode = #tpu.pipeline_mode<synchronous>, transform_indices = @transform_7, window_bounds = array<i64: 128, 256>}, {pipeline_mode = #tpu.pipeline_mode<synchronous>, transform_indices = @transform_8, window_bounds = array<i64: 1, 256>}, {transform_indices = @transform_9, window_bounds = array<i64: 16, 256>}]} {
    %c0 = arith.constant 0 : index
    %c0_0 = arith.constant 0 : index
    %0 = vector.load %arg1[%c0, %c0_0] : memref<16x256xbf16, #tpu.memory_space<vmem>>, vector<16x256xbf16>
    %c0_1 = arith.constant 0 : index
    %c0_2 = arith.constant 0 : index
    %1 = vector.load %arg2[%c0_1, %c0_2] : memref<256x128xbf16, #tpu.memory_space<vmem>>, vector<256x128xbf16>
    %cst = arith.constant dense<0.000000e+00> : vector<16x128xf32>
    %2 = tpu.matmul %0, %1, %cst {dimension_numbers = #tpu.dot_dimension_numbers<[1], [0], [0], [1], [0, 0, 1, 1], [], []>} : vector<16x256xbf16>, vector<256x128xbf16>, vector<16x128xf32> -> vector<16x128xf32>
    %c0_3 = arith.constant 0 : index
    %c0_4 = arith.constant 0 : index
    %3 = vector.load %arg3[%c0_3, %c0_4] : memref<1x128xf32, #tpu.memory_space<vmem>>, vector<1x128xf32>
    %4 = vector.broadcast %3 : vector<1x128xf32> to vector<16x128xf32>
    %5 = arith.addf %2, %4 : vector<16x128xf32>
    %cst_5 = arith.constant 0.000000e+00 : f32
    %6 = vector.broadcast %cst_5 : f32 to vector<16x128xf32>
    %7 = arith.maximumf %5, %6 : vector<16x128xf32>
    %8 = arith.truncf %7 : vector<16x128xf32> to vector<16x128xbf16>
    %c0_6 = arith.constant 0 : index
    %c0_7 = arith.constant 0 : index
    %9 = vector.load %arg4[%c0_6, %c0_7] : memref<128x128xbf16, #tpu.memory_space<vmem>>, vector<128x128xbf16>
    %cst_8 = arith.constant dense<0.000000e+00> : vector<16x128xf32>
    %10 = tpu.matmul %8, %9, %cst_8 {dimension_numbers = #tpu.dot_dimension_numbers<[1], [0], [0], [1], [0, 0, 1, 1], [], []>} : vector<16x128xbf16>, vector<128x128xbf16>, vector<16x128xf32> -> vector<16x128xf32>
    %c0_9 = arith.constant 0 : index
    %c0_10 = arith.constant 0 : index
    %11 = vector.load %arg5[%c0_9, %c0_10] : memref<1x128xf32, #tpu.memory_space<vmem>>, vector<1x128xf32>
    %12 = vector.broadcast %11 : vector<1x128xf32> to vector<16x128xf32>
    %13 = arith.addf %10, %12 : vector<16x128xf32>
    %cst_11 = arith.constant 0.000000e+00 : f32
    %14 = vector.broadcast %cst_11 : f32 to vector<16x128xf32>
    %15 = arith.maximumf %13, %14 : vector<16x128xf32>
    %16 = arith.truncf %15 : vector<16x128xf32> to vector<16x128xbf16>
    %c0_12 = arith.constant 0 : index
    %c0_13 = arith.constant 0 : index
    %17 = vector.load %arg6[%c0_12, %c0_13] : memref<128x128xbf16, #tpu.memory_space<vmem>>, vector<128x128xbf16>
    %cst_14 = arith.constant dense<0.000000e+00> : vector<16x128xf32>
    %18 = tpu.matmul %16, %17, %cst_14 {dimension_numbers = #tpu.dot_dimension_numbers<[1], [0], [0], [1], [0, 0, 1, 1], [], []>} : vector<16x128xbf16>, vector<128x128xbf16>, vector<16x128xf32> -> vector<16x128xf32>
    %c0_15 = arith.constant 0 : index
    %c0_16 = arith.constant 0 : index
    %19 = vector.load %arg7[%c0_15, %c0_16] : memref<1x128xf32, #tpu.memory_space<vmem>>, vector<1x128xf32>
    %20 = vector.broadcast %19 : vector<1x128xf32> to vector<16x128xf32>
    %21 = arith.addf %18, %20 : vector<16x128xf32>
    %cst_17 = arith.constant 0.000000e+00 : f32
    %22 = vector.broadcast %cst_17 : f32 to vector<16x128xf32>
    %23 = arith.maximumf %21, %22 : vector<16x128xf32>
    %24 = arith.truncf %23 : vector<16x128xf32> to vector<16x128xbf16>
    %c0_18 = arith.constant 0 : index
    %c0_19 = arith.constant 0 : index
    %25 = vector.load %arg8[%c0_18, %c0_19] : memref<128x256xbf16, #tpu.memory_space<vmem>>, vector<128x256xbf16>
    %cst_20 = arith.constant dense<0.000000e+00> : vector<16x256xf32>
    %26 = tpu.matmul %24, %25, %cst_20 {dimension_numbers = #tpu.dot_dimension_numbers<[1], [0], [0], [1], [0, 0, 1, 1], [], []>} : vector<16x128xbf16>, vector<128x256xbf16>, vector<16x256xf32> -> vector<16x256xf32>
    %c0_21 = arith.constant 0 : index
    %c0_22 = arith.constant 0 : index
    %27 = vector.load %arg9[%c0_21, %c0_22] : memref<1x256xf32, #tpu.memory_space<vmem>>, vector<1x256xf32>
    %28 = vector.broadcast %27 : vector<1x256xf32> to vector<16x256xf32>
    %29 = arith.addf %26, %28 : vector<16x256xf32>
    %cst_23 = arith.constant 0.000000e+00 : f32
    %30 = vector.broadcast %cst_23 : f32 to vector<16x256xf32>
    %31 = arith.maximumf %29, %30 : vector<16x256xf32>
    %c0_24 = arith.constant 0 : index
    %c0_25 = arith.constant 0 : index
    %32 = vector.load %arg10[%c0_24, %c0_25] : memref<16x256xf32, #tpu.memory_space<vmem>>, vector<16x256xf32>
    tpu.vector_store %arg10[%c0_24, %c0_25], %31 {strides = array<i32>} : memref<16x256xf32, #tpu.memory_space<vmem>>, vector<16x256xf32>,
    return
  }
  func.func @transform_0(%arg0: i32) -> (i32, i32) {
    %c0_i32 = arith.constant 0 : i32
    %c0_i32_0 = arith.constant 0 : i32
    return %arg0, %c0_i32 : i32, i32
  }
  func.func @transform_1(%arg0: i32) -> (i32, i32) {
    %c0_i32 = arith.constant 0 : i32
    %c0_i32_0 = arith.constant 0 : i32
    %c0_i32_1 = arith.constant 0 : i32
    return %c0_i32, %c0_i32_0 : i32, i32
  }
  func.func @transform_2(%arg0: i32) -> (i32, i32) {
    %c0_i32 = arith.constant 0 : i32
    %c0_i32_0 = arith.constant 0 : i32
    %c0_i32_1 = arith.constant 0 : i32
    return %c0_i32, %c0_i32_0 : i32, i32
  }
  func.func @transform_3(%arg0: i32) -> (i32, i32) {
    %c0_i32 = arith.constant 0 : i32
    %c0_i32_0 = arith.constant 0 : i32
    %c0_i32_1 = arith.constant 0 : i32
    return %c0_i32, %c0_i32_0 : i32, i32
  }
  func.func @transform_4(%arg0: i32) -> (i32, i32) {
    %c0_i32 = arith.constant 0 : i32
    %c0_i32_0 = arith.constant 0 : i32
    %c0_i32_1 = arith.constant 0 : i32
    return %c0_i32, %c0_i32_0 : i32, i32
  }
  func.func @transform_5(%arg0: i32) -> (i32, i32) {
    %c0_i32 = arith.constant 0 : i32
    %c0_i32_0 = arith.constant 0 : i32
    %c0_i32_1 = arith.constant 0 : i32
    return %c0_i32, %c0_i32_0 : i32, i32
  }
  func.func @transform_6(%arg0: i32) -> (i32, i32) {
    %c0_i32 = arith.constant 0 : i32
    %c0_i32_0 = arith.constant 0 : i32
    %c0_i32_1 = arith.constant 0 : i32
    return %c0_i32, %c0_i32_0 : i32, i32
  }
  func.func @transform_7(%arg0: i32) -> (i32, i32) {
    %c0_i32 = arith.constant 0 : i32
    %c0_i32_0 = arith.constant 0 : i32
    %c0_i32_1 = arith.constant 0 : i32
    return %c0_i32, %c0_i32_0 : i32, i32
  }
  func.func @transform_8(%arg0: i32) -> (i32, i32) {
    %c0_i32 = arith.constant 0 : i32
    %c0_i32_0 = arith.constant 0 : i32
    %c0_i32_1 = arith.constant 0 : i32
    return %c0_i32, %c0_i32_0 : i32, i32
  }
  func.func @transform_9(%arg0: i32) -> (i32, i32) {
    %c0_i32 = arith.constant 0 : i32
    %c0_i32_0 = arith.constant 0 : i32
    return %arg0, %c0_i32 : i32, i32
  }
}

module attributes {stable_mosaic.version = 11 : i64} {
  func.func @kernel(%arg0: i32, %arg1: memref<16x256xbf16, #tpu.memory_space<vmem>>, %arg2: memref<256x128xbf16, #tpu.memory_space<vmem>>, %arg3: memref<1x128xf32, #tpu.memory_space<vmem>>, %arg4: memref<128x128xbf16, #tpu.memory_space<vmem>>, %arg5: memref<1x128xf32, #tpu.memory_space<vmem>>, %arg6: memref<128x128xbf16, #tpu.memory_space<vmem>>, %arg7: memref<1x128xf32, #tpu.memory_space<vmem>>, %arg8: memref<128x256xbf16, #tpu.memory_space<vmem>>, %arg9: memref<1x256xf32, #tpu.memory_space<vmem>>, %arg10: memref<16x256xf32, #tpu.memory_space<vmem>>) attributes {dimension_semantics = [#tpu.dimension_semantics<parallel>], iteration_bounds = array<i64: 1>, scalar_prefetch = 0 : i64, scratch_operands = 0 : i64, tpu.core_type = #tpu.core_type<tc>, window_params = [{transform_indices = @transform_0, window_bounds = array<i64: 16, 256>}, {pipeline_mode = #tpu.pipeline_mode<synchronous>, transform_indices = @transform_1, window_bounds = array<i64: 256, 128>}, {pipeline_mode = #tpu.pipeline_mode<synchronous>, transform_indices = @transform_2, window_bounds = array<i64: 1, 128>}, {pipeline_mode = #tpu.pipeline_mode<synchronous>, transform_indices = @transform_3, window_bounds = array<i64: 128, 128>}, {pipeline_mode = #tpu.pipeline_mode<synchronous>, transform_indices = @transform_4, window_bounds = array<i64: 1, 128>}, {pipeline_mode = #tpu.pipeline_mode<synchronous>, transform_indices = @transform_5, window_bounds = array<i64: 128, 128>}, {pipeline_mode = #tpu.pipeline_mode<synchronous>, transform_indices = @transform_6, window_bounds = array<i64: 1, 128>}, {pipeline_mode = #tpu.pipeline_mode<synchronous>, transform_indices = @transform_7, window_bounds = array<i64: 128, 256>}, {pipeline_mode = #tpu.pipeline_mode<synchronous>, transform_indices = @transform_8, window_bounds = array<i64: 1, 256>}, {transform_indices = @transform_9, window_bounds = array<i64: 16, 256>}]} {
    %c0 = arith.constant 0 : index
    %c0_0 = arith.constant 0 : index
    %0 = vector.load %arg1[%c0, %c0_0] : memref<16x256xbf16, #tpu.memory_space<vmem>>, vector<16x256xbf16>
    %c0_1 = arith.constant 0 : index
    %c0_2 = arith.constant 0 : index
    %1 = vector.load %arg2[%c0_1, %c0_2] : memref<256x128xbf16, #tpu.memory_space<vmem>>, vector<256x128xbf16>
    %cst = arith.constant dense<0.000000e+00> : vector<16x128xf32>
    %2 = tpu.matmul %0, %1, %cst {dimension_numbers = #tpu.dot_dimension_numbers<[1], [0], [0], [1], [0, 0, 1, 1], [], []>} : vector<16x256xbf16>, vector<256x128xbf16>, vector<16x128xf32> -> vector<16x128xf32>
    %c0_3 = arith.constant 0 : index
    %c0_4 = arith.constant 0 : index
    %3 = vector.load %arg3[%c0_3, %c0_4] : memref<1x128xf32, #tpu.memory_space<vmem>>, vector<1x128xf32>
    %4 = vector.broadcast %3 : vector<1x128xf32> to vector<16x128xf32>
    %5 = arith.addf %2, %4 : vector<16x128xf32>
    %cst_5 = arith.constant 0.000000e+00 : f32
    %6 = vector.broadcast %cst_5 : f32 to vector<16x128xf32>
    %7 = arith.maximumf %5, %6 : vector<16x128xf32>
    %8 = arith.truncf %7 : vector<16x128xf32> to vector<16x128xbf16>
    %c0_6 = arith.constant 0 : index
    %c0_7 = arith.constant 0 : index
    %9 = vector.load %arg4[%c0_6, %c0_7] : memref<128x128xbf16, #tpu.memory_space<vmem>>, vector<128x128xbf16>
    %cst_8 = arith.constant dense<0.000000e+00> : vector<16x128xf32>
    %10 = tpu.matmul %8, %9, %cst_8 {dimension_numbers = #tpu.dot_dimension_numbers<[1], [0], [0], [1], [0, 0, 1, 1], [], []>} : vector<16x128xbf16>, vector<128x128xbf16>, vector<16x128xf32> -> vector<16x128xf32>
    %c0_9 = arith.constant 0 : index
    %c0_10 = arith.constant 0 : index
    %11 = vector.load %arg5[%c0_9, %c0_10] : memref<1x128xf32, #tpu.memory_space<vmem>>, vector<1x128xf32>
    %12 = vector.broadcast %11 : vector<1x128xf32> to vector<16x128xf32>
    %13 = arith.addf %10, %12 : vector<16x128xf32>
    %cst_11 = arith.constant 0.000000e+00 : f32
    %14 = vector.broadcast %cst_11 : f32 to vector<16x128xf32>
    %15 = arith.maximumf %13, %14 : vector<16x128xf32>
    %16 = arith.truncf %15 : vector<16x128xf32> to vector<16x128xbf16>
    %c0_12 = arith.constant 0 : index
    %c0_13 = arith.constant 0 : index
    %17 = vector.load %arg6[%c0_12, %c0_13] : memref<128x128xbf16, #tpu.memory_space<vmem>>, vector<128x128xbf16>
    %cst_14 = arith.constant dense<0.000000e+00> : vector<16x128xf32>
    %18 = tpu.matmul %16, %17, %cst_14 {dimension_numbers = #tpu.dot_dimension_numbers<[1], [0], [0], [1], [0, 0, 1, 1], [], []>} : vector<16x128xbf16>, vector<128x128xbf16>, vector<16x128xf32> -> vector<16x128xf32>
    %c0_15 = arith.constant 0 : index
    %c0_16 = arith.constant 0 : index
    %19 = vector.load %arg7[%c0_15, %c0_16] : memref<1x128xf32, #tpu.memory_space<vmem>>, vector<1x128xf32>
    %20 = vector.broadcast %19 : vector<1x128xf32> to vector<16x128xf32>
    %21 = arith.addf %18, %20 : vector<16x128xf32>
    %cst_17 = arith.constant 0.000000e+00 : f32
    %22 = vector.broadcast %cst_17 : f32 to vector<16x128xf32>
    %23 = arith.maximumf %21, %22 : vector<16x128xf32>
    %24 = arith.truncf %23 : vector<16x128xf32> to vector<16x128xbf16>
    %c0_18 = arith.constant 0 : index
    %c0_19 = arith.constant 0 : index
    %25 = vector.load %arg8[%c0_18, %c0_19] : memref<128x256xbf16, #tpu.memory_space<vmem>>, vector<128x256xbf16>
    %cst_20 = arith.constant dense<0.000000e+00> : vector<16x256xf32>
    %26 = tpu.matmul %24, %25, %cst_20 {dimension_numbers = #tpu.dot_dimension_numbers<[1], [0], [0], [1], [0, 0, 1, 1], [], []>} : vector<16x128xbf16>, vector<128x256xbf16>, vector<16x256xf32> -> vector<16x256xf32>
    %c0_21 = arith.constant 0 : index
    %c0_22 = arith.constant 0 : index
    %27 = vector.load %arg9[%c0_21, %c0_22] : memref<1x256xf32, #tpu.memory_space<vmem>>, vector<1x256xf32>
    %28 = vector.broadcast %27 : vector<1x256xf32> to vector<16x256xf32>
    %29 = arith.addf %26, %28 : vector<16x256xf32>
    %cst_23 = arith.constant 0.000000e+00 : f32
    %30 = vector.broadcast %cst_23 : f32 to vector<16x256xf32>
    %31 = arith.maximumf %29, %30 : vector<16x256xf32>
    %c0_24 = arith.constant 0 : index
    %c0_25 = arith.constant 0 : index
    %32 = vector.load %arg10[%c0_24, %c0_25] : memref<16x256xf32, #tpu.memory_space<vmem>>, vector<16x256xf32>
    tpu.vector_store %arg10[%c0_24, %c0_25], %31 {strides = array<i32>} : memref<16x256xf32, #tpu.memory_space<vmem>>, vector<16x256xf32>,
    return
  }
  func.func @transform_0(%arg0: i32) -> (i32, i32) {
    %c0_i32 = arith.constant 0 : i32
    %c0_i32_0 = arith.constant 0 : i32
    return %arg0, %c0_i32 : i32, i32
  }
  func.func @transform_1(%arg0: i32) -> (i32, i32) {
    %c0_i32 = arith.constant 0 : i32
    %c0_i32_0 = arith.constant 0 : i32
    %c0_i32_1 = arith.constant 0 : i32
    return %c0_i32, %c0_i32_0 : i32, i32
  }
  func.func @transform_2(%arg0: i32) -> (i32, i32) {
    %c0_i32 = arith.constant 0 : i32
    %c0_i32_0 = arith.constant 0 : i32
    %c0_i32_1 = arith.constant 0 : i32
    return %c0_i32, %c0_i32_0 : i32, i32
  }
  func.func @transform_3(%arg0: i32) -> (i32, i32) {
    %c0_i32 = arith.constant 0 : i32
    %c0_i32_0 = arith.constant 0 : i32
    %c0_i32_1 = arith.constant 0 : i32
    return %c0_i32, %c0_i32_0 : i32, i32
  }
  func.func @transform_4(%arg0: i32) -> (i32, i32) {
    %c0_i32 = arith.constant 0 : i32
    %c0_i32_0 = arith.constant 0 : i32
    %c0_i32_1 = arith.constant 0 : i32
    return %c0_i32, %c0_i32_0 : i32, i32
  }
  func.func @transform_5(%arg0: i32) -> (i32, i32) {
    %c0_i32 = arith.constant 0 : i32
    %c0_i32_0 = arith.constant 0 : i32
    %c0_i32_1 = arith.constant 0 : i32
    return %c0_i32, %c0_i32_0 : i32, i32
  }
  func.func @transform_6(%arg0: i32) -> (i32, i32) {
    %c0_i32 = arith.constant 0 : i32
    %c0_i32_0 = arith.constant 0 : i32
    %c0_i32_1 = arith.constant 0 : i32
    return %c0_i32, %c0_i32_0 : i32, i32
  }
  func.func @transform_7(%arg0: i32) -> (i32, i32) {
    %c0_i32 = arith.constant 0 : i32
    %c0_i32_0 = arith.constant 0 : i32
    %c0_i32_1 = arith.constant 0 : i32
    return %c0_i32, %c0_i32_0 : i32, i32
  }
  func.func @transform_8(%arg0: i32) -> (i32, i32) {
    %c0_i32 = arith.constant 0 : i32
    %c0_i32_0 = arith.constant 0 : i32
    %c0_i32_1 = arith.constant 0 : i32
    return %c0_i32, %c0_i32_0 : i32, i32
  }
  func.func @transform_9(%arg0: i32) -> (i32, i32) {
    %c0_i32 = arith.constant 0 : i32
    %c0_i32_0 = arith.constant 0 : i32
    return %arg0, %c0_i32 : i32, i32
  }
}

</mosaic_0001>

<llo_original>
// kernel: tpu_custom_call.1
$region0: #{tpu_custom_call.1}
  #allocation0 [shape = 'u32[]', space=smem, size = 0x4, offset = 0x4, fixed_abs, tag = 'smem constant byte address 0x4 - core index']
  #allocation1 [shape = 'u32[144,128]{1,0:T(1,128)}', space=vmem, size = 0x12000, scoped, tag = 'internal scratch']
  %s0 = inlined_call_operand.hbm [shape: bf16[16,256], index: 0, kind: input, shape index: {}]
  %s1 = inlined_call_operand.hbm [shape: bf16[256,128], index: 1, kind: input, shape index: {}]
  %s2 = inlined_call_operand.vmem [shape: f32[1,128], index: 2, kind: input, shape index: {}]
  %s3 = inlined_call_operand.hbm [shape: bf16[128,128], index: 3, kind: input, shape index: {}]
  %s4 = inlined_call_operand.vmem [shape: f32[1,128], index: 4, kind: input, shape index: {}]
  %s5 = inlined_call_operand.hbm [shape: bf16[128,128], index: 5, kind: input, shape index: {}]
  %s6 = inlined_call_operand.vmem [shape: f32[1,128], index: 6, kind: input, shape index: {}]
  %s7 = inlined_call_operand.hbm [shape: bf16[128,256], index: 7, kind: input, shape index: {}]
  %s8 = inlined_call_operand.vmem [shape: f32[1,256], index: 8, kind: input, shape index: {}]
  %s9 = inlined_call_operand.hbm [shape: f32[16,256], index: 9, kind: output, shape index: {}]
  %s10 = sld [smem:[#allocation0]]
  $region66: #{tpu_custom_call.1} parent=0
    _
  %s12 = ssub.s32 1, %s10
  %s13 = scalar_select 0, %s12, %s10
  $region1: #{tpu_custom_call.1} parent=0
    #allocation2 [shape = 'u8[8192]{0}', space=vmem, size = 0x2000, scoped, tag = 'input window, operand 0, single buffered']
    #allocation3 [shape = 's32[1]{0}', space=sflag, size = 0x4, scoped, tag = 'scoped memory for tpu_custom_call.1']
    #allocation4 [shape = 's32[1]{0}', space=sflag, size = 0x4, scoped, tag = 'scoped memory for tpu_custom_call.1']
    #allocation5 [shape = 'u8[65536]{0}', space=vmem, size = 0x10000, scoped, tag = 'input window, operand 1, single buffered']
    #allocation6 [shape = 's32[1]{0}', space=sflag, size = 0x4, scoped, tag = 'scoped memory for tpu_custom_call.1']
    #allocation7 [shape = 'u8[32768]{0}', space=vmem, size = 0x8000, scoped, tag = 'input window, operand 3, single buffered']
    #allocation8 [shape = 'u8[32768]{0}', space=vmem, size = 0x8000, scoped, tag = 'input window, operand 5, single buffered']
    #allocation9 [shape = 's32[1]{0}', space=sflag, size = 0x4, scoped, tag = 'scoped memory for tpu_custom_call.1']
    #allocation10 [shape = 'u8[65536]{0}', space=vmem, size = 0x10000, scoped, tag = 'input window, operand 7, single buffered']
    #allocation11 [shape = 'u8[16384]{0}', space=vmem, size = 0x4000, scoped, tag = 'output window, operand 0, single buffered']
    %14 = vsyncpa [#allocation3], 0
    %15 = vsyncpa [#allocation6], 0
    %16 = vsyncpa [#allocation9], 0
    %17 = vsyncpa [#allocation4], 0
    // Predicated region
    $region2: #{tpu_custom_call.1} parent=1 // pred_check
      _
    $region3: #{tpu_custom_call.1} parent=1 // pred_check_branch
      %19 = sbr.rel (0) target = $region5
    $region4: #{tpu_custom_call.1} parent=1 // pred_region
      %s21 = ssub.s32 256, 256
      %22 = vsyncadd [#allocation3], %s21
      %s23 = sshll.u32 [#allocation2], 4
      %s24 = int_to_ptr.vmem [resolvable:$true] %s23
      %29 = dma.hbm_to_vmem [thread:$0]  %s0, 256, %s24, [#allocation3], 128, 128, 8
    $region5: #{tpu_custom_call.1} parent=1 // pred_fallthru
      _
    // Predicated region
    $region6: #{tpu_custom_call.1} parent=1 // pred_check
      _
    $region7: #{tpu_custom_call.1} parent=1 // pred_check_branch
      %31 = sbr.rel (0) target = $region9
    $region8: #{tpu_custom_call.1} parent=1 // pred_region
      %s33 = ssub.s32 2048, 2048
      %34 = vsyncadd [#allocation6], %s33
      %s35 = sshll.u32 [#allocation5], 4
      %s36 = int_to_ptr.vmem [resolvable:$true] %s35
      %41 = dma.hbm_to_vmem [thread:$0]  %s1, 2048, %s36, [#allocation6], 64, 64, 4
    $region9: #{tpu_custom_call.1} parent=1 // pred_fallthru
      _
    // Predicated region
    $region10: #{tpu_custom_call.1} parent=1 // pred_check
      _
    $region11: #{tpu_custom_call.1} parent=1 // pred_check_branch
      %43 = sbr.rel (0) target = $region13
    $region12: #{tpu_custom_call.1} parent=1 // pred_region
      _
    $region13: #{tpu_custom_call.1} parent=1 // pred_fallthru
      _
    // Predicated region
    $region14: #{tpu_custom_call.1} parent=1 // pred_check
      _
    $region15: #{tpu_custom_call.1} parent=1 // pred_check_branch
      %45 = sbr.rel (0) target = $region17
    $region16: #{tpu_custom_call.1} parent=1 // pred_region
      %s47 = ssub.s32 1024, 1024
      %48 = vsyncadd [#allocation6], %s47
      %s49 = sshll.u32 [#allocation7], 4
      %s50 = int_to_ptr.vmem [resolvable:$true] %s49
      %55 = dma.hbm_to_vmem [thread:$0]  %s3, 1024, %s50, [#allocation6], 64, 64, 4
    $region17: #{tpu_custom_call.1} parent=1 // pred_fallthru
      _
    // Predicated region
    $region18: #{tpu_custom_call.1} parent=1 // pred_check
      _
    $region19: #{tpu_custom_call.1} parent=1 // pred_check_branch
      %57 = sbr.rel (0) target = $region21
    $region20: #{tpu_custom_call.1} parent=1 // pred_region
      _
    $region21: #{tpu_custom_call.1} parent=1 // pred_fallthru
      _
    // Predicated region
    $region22: #{tpu_custom_call.1} parent=1 // pred_check
      _
    $region23: #{tpu_custom_call.1} parent=1 // pred_check_branch
      %59 = sbr.rel (0) target = $region25
    $region24: #{tpu_custom_call.1} parent=1 // pred_region
      %s61 = ssub.s32 1024, 1024
      %62 = vsyncadd [#allocation9], %s61
      %s63 = sshll.u32 [#allocation8], 4
      %s64 = int_to_ptr.vmem [resolvable:$true] %s63
      %69 = dma.hbm_to_vmem [thread:$0]  %s5, 1024, %s64, [#allocation9], 64, 64, 4
    $region25: #{tpu_custom_call.1} parent=1 // pred_fallthru
      _
    // Predicated region
    $region26: #{tpu_custom_call.1} parent=1 // pred_check
      _
    $region27: #{tpu_custom_call.1} parent=1 // pred_check_branch
      %71 = sbr.rel (0) target = $region29
    $region28: #{tpu_custom_call.1} parent=1 // pred_region
      _
    $region29: #{tpu_custom_call.1} parent=1 // pred_fallthru
      _
    // Predicated region
    $region30: #{tpu_custom_call.1} parent=1 // pred_check
      _
    $region31: #{tpu_custom_call.1} parent=1 // pred_check_branch
      %73 = sbr.rel (0) target = $region33
    $region32: #{tpu_custom_call.1} parent=1 // pred_region
      %s75 = ssub.s32 2048, 2048
      %76 = vsyncadd [#allocation9], %s75
      %s77 = sshll.u32 [#allocation10], 4
      %s78 = int_to_ptr.vmem [resolvable:$true] %s77
      %83 = dma.hbm_to_vmem [thread:$0]  %s7, 2048, %s78, [#allocation9], 128, 128, 8
    $region33: #{tpu_custom_call.1} parent=1 // pred_fallthru
      _
    // Predicated region
    $region34: #{tpu_custom_call.1} parent=1 // pred_check
      _
    $region35: #{tpu_custom_call.1} parent=1 // pred_check_branch
      %85 = sbr.rel (0) target = $region37
    $region36: #{tpu_custom_call.1} parent=1 // pred_region
      _
    $region37: #{tpu_custom_call.1} parent=1 // pred_fallthru
      _
    // Predicated region
    $region38: #{tpu_custom_call.1} parent=1 // pred_check
      _
    $region39: #{tpu_custom_call.1} parent=1 // pred_check_branch
      %87 = sbr.rel (0) target = $region41
    $region40: #{tpu_custom_call.1} parent=1 // pred_region
      %88 = dma.done [#allocation3], 256
    $region41: #{tpu_custom_call.1} parent=1 // pred_fallthru
      _
    // Predicated region
    $region42: #{tpu_custom_call.1} parent=1 // pred_check
      _
    $region43: #{tpu_custom_call.1} parent=1 // pred_check_branch
      %90 = sbr.rel (0) target = $region45
    $region44: #{tpu_custom_call.1} parent=1 // pred_region
      %91 = dma.done [#allocation6], 2048
    $region45: #{tpu_custom_call.1} parent=1 // pred_fallthru
      _
    // Predicated region
    $region46: #{tpu_custom_call.1} parent=1 // pred_check
      _
    $region47: #{tpu_custom_call.1} parent=1 // pred_check_branch
      %93 = sbr.rel (0) target = $region49
    $region48: #{tpu_custom_call.1} parent=1 // pred_region
      %94 = dma.done [#allocation6], 1024
    $region49: #{tpu_custom_call.1} parent=1 // pred_fallthru
      _
    // Predicated region
    $region50: #{tpu_custom_call.1} parent=1 // pred_check
      _
    $region51: #{tpu_custom_call.1} parent=1 // pred_check_branch
      %96 = sbr.rel (0) target = $region53
    $region52: #{tpu_custom_call.1} parent=1 // pred_region
      %97 = dma.done [#allocation9], 1024
    $region53: #{tpu_custom_call.1} parent=1 // pred_fallthru
      _
    // Predicated region
    $region54: #{tpu_custom_call.1} parent=1 // pred_check
      _
    $region55: #{tpu_custom_call.1} parent=1 // pred_check_branch
      %99 = sbr.rel (0) target = $region57
    $region56: #{tpu_custom_call.1} parent=1 // pred_region
      %100 = dma.done [#allocation9], 2048
    $region57: #{tpu_custom_call.1} parent=1 // pred_fallthru
      _
    %v102 = vld [vmem:[#allocation2] sm:$0xff]
    %v103 = vld [vmem:[#allocation2 + $0x8] sm:$0xff]
    %v104 = vld [vmem:[#allocation5] sm:$0xf]
    %v105 = vld [vmem:[#allocation5 + $0x4] sm:$0xf]
    %v106 = vld [vmem:[#allocation5 + $0x8] sm:$0xf]
    %v107 = vld [vmem:[#allocation5 + $0xc] sm:$0xf]
    %v108 = vld [vmem:[#allocation5 + $0x10] sm:$0xf]
    %v109 = vld [vmem:[#allocation5 + $0x14] sm:$0xf]
    %v110 = vld [vmem:[#allocation5 + $0x18] sm:$0xf]
    %v111 = vld [vmem:[#allocation5 + $0x1c] sm:$0xf]
    %v112 = vld [vmem:[#allocation5 + $0x20] sm:$0xf]
    %v113 = vld [vmem:[#allocation5 + $0x24] sm:$0xf]
    %v114 = vld [vmem:[#allocation5 + $0x28] sm:$0xf]
    %v115 = vld [vmem:[#allocation5 + $0x2c] sm:$0xf]
    %v116 = vld [vmem:[#allocation5 + $0x30] sm:$0xf]
    %v117 = vld [vmem:[#allocation5 + $0x34] sm:$0xf]
    %v118 = vld [vmem:[#allocation5 + $0x38] sm:$0xf]
    %v119 = vld [vmem:[#allocation5 + $0x3c] sm:$0xf]
    %v120 = vld [vmem:[#allocation5 + $0x40] sm:$0xf]
    %v121 = vld [vmem:[#allocation5 + $0x44] sm:$0xf]
    %v122 = vld [vmem:[#allocation5 + $0x48] sm:$0xf]
    %v123 = vld [vmem:[#allocation5 + $0x4c] sm:$0xf]
    %v124 = vld [vmem:[#allocation5 + $0x50] sm:$0xf]
    %v125 = vld [vmem:[#allocation5 + $0x54] sm:$0xf]
    %v126 = vld [vmem:[#allocation5 + $0x58] sm:$0xf]
    %v127 = vld [vmem:[#allocation5 + $0x5c] sm:$0xf]
    %v128 = vld [vmem:[#allocation5 + $0x60] sm:$0xf]
    %v129 = vld [vmem:[#allocation5 + $0x64] sm:$0xf]
    %v130 = vld [vmem:[#allocation5 + $0x68] sm:$0xf]
    %v131 = vld [vmem:[#allocation5 + $0x6c] sm:$0xf]
    %v132 = vld [vmem:[#allocation5 + $0x70] sm:$0xf]
    %v133 = vld [vmem:[#allocation5 + $0x74] sm:$0xf]
    %v134 = vld [vmem:[#allocation5 + $0x78] sm:$0xf]
    %v135 = vld [vmem:[#allocation5 + $0x7c] sm:$0xf]
    %v136 = vld [vmem:[%s2] sm:$0x1]
    %v138 = vlaneseq
    %v139 = vshrl.u32 %v138, 7
    %v140 = vsub.s32 0, %v139
    %v141 = vrot.slane %v136, %v140
    %v145 = vunpack.c.l.b16 %v102
    %v146 = vunpack.c.h.b16 %v102
    %v147 = vunpack.c.l.b16 %v103
    %v148 = vunpack.c.h.b16 %v103
    %v149 = vpack.c.b16 %v147, %v145
    %v150 = vpack.c.b16 %v148, %v146
    %v185 = vunpack.c.l.b16 %v104
    %v186 = vunpack.c.l.b16 %v105
    %v187 = vunpack.c.l.b16 %v106
    %v188 = vunpack.c.l.b16 %v107
    %v189 = vunpack.c.l.b16 %v108
    %v190 = vunpack.c.l.b16 %v109
    %v191 = vunpack.c.l.b16 %v110
    %v192 = vunpack.c.l.b16 %v111
    %v193 = vunpack.c.l.b16 %v112
    %v194 = vunpack.c.l.b16 %v113
    %v195 = vunpack.c.l.b16 %v114
    %v196 = vunpack.c.l.b16 %v115
    %v197 = vunpack.c.l.b16 %v116
    %v198 = vunpack.c.l.b16 %v117
    %v199 = vunpack.c.l.b16 %v118
    %v200 = vunpack.c.l.b16 %v119
    %v201 = vunpack.c.l.b16 %v120
    %v202 = vunpack.c.l.b16 %v121
    %v203 = vunpack.c.l.b16 %v122
    %v204 = vunpack.c.l.b16 %v123
    %v205 = vunpack.c.l.b16 %v124
    %v206 = vunpack.c.l.b16 %v125
    %v207 = vunpack.c.l.b16 %v126
    %v208 = vunpack.c.l.b16 %v127
    %v209 = vunpack.c.l.b16 %v128
    %v210 = vunpack.c.l.b16 %v129
    %v211 = vunpack.c.l.b16 %v130
    %v212 = vunpack.c.l.b16 %v131
    %v213 = vunpack.c.l.b16 %v132
    %v214 = vunpack.c.l.b16 %v133
    %v215 = vunpack.c.l.b16 %v134
    %v216 = vunpack.c.l.b16 %v135
    %v217 = vpack.c.b16 %v186, %v185
    %v218 = vpack.c.b16 %v188, %v187
    %v219 = vpack.c.b16 %v190, %v189
    %v220 = vpack.c.b16 %v192, %v191
    %v221 = vpack.c.b16 %v194, %v193
    %v222 = vpack.c.b16 %v196, %v195
    %v223 = vpack.c.b16 %v198, %v197
    %v224 = vpack.c.b16 %v200, %v199
    %v225 = vpack.c.b16 %v202, %v201
    %v226 = vpack.c.b16 %v204, %v203
    %v227 = vpack.c.b16 %v206, %v205
    %v228 = vpack.c.b16 %v208, %v207
    %v229 = vpack.c.b16 %v210, %v209
    %v230 = vpack.c.b16 %v212, %v211
    %v231 = vpack.c.b16 %v214, %v213
    %v232 = vpack.c.b16 %v216, %v215
    %249 = vmatprep.subr.bf16.mxu0 0
    %250 = vmatpush1.bf16.msra.mxu0 %v224
    %251 = vmatprep.subr.bf16.mxu0 0
    %252 = vmatpush1.bf16.msra.mxu0 %v223
    %253 = vmatprep.subr.bf16.mxu0 0
    %254 = vmatpush1.bf16.msra.mxu0 %v222
    %255 = vmatprep.subr.bf16.mxu0 0
    %256 = vmatpush1.bf16.msra.mxu0 %v221
    %257 = vmatprep.subr.bf16.mxu0 0
    %258 = vmatpush1.bf16.msra.mxu0 %v220
    %259 = vmatprep.subr.bf16.mxu0 0
    %260 = vmatpush1.bf16.msra.mxu0 %v219
    %261 = vmatprep.subr.bf16.mxu0 0
    %262 = vmatpush1.bf16.msra.mxu0 %v218
    %263 = vmatprep.subr.bf16.mxu0 0
    %264 = vmatpush1.bf16.msra.mxu0 %v217
    %265 = vmatprep.subr.bf16.mxu0 0
    %266 = vmatpush2.bf16.msra.mxu0 %v232
    %267 = vmatprep.subr.bf16.mxu0 0
    %268 = vmatpush2.bf16.msra.mxu0 %v231
    %269 = vmatprep.subr.bf16.mxu0 0
    %270 = vmatpush2.bf16.msra.mxu0 %v230
    %271 = vmatprep.subr.bf16.mxu0 0
    %272 = vmatpush2.bf16.msra.mxu0 %v229
    %273 = vmatprep.subr.bf16.mxu0 0
    %274 = vmatpush2.bf16.msra.mxu0 %v228
    %275 = vmatprep.subr.bf16.mxu0 0
    %276 = vmatpush2.bf16.msra.mxu0 %v227
    %277 = vmatprep.subr.bf16.mxu0 0
    %278 = vmatpush2.bf16.msra.mxu0 %v226
    %279 = vmatprep.subr.bf16.mxu0 0
    %280 = vmatpush2.bf16.msra.mxu0 %v225
    %281 = vmatprep.mubr.bf16.mxu0 %v150
    %282 = vmatmul.mubr.bf16.gmra.mxu0 %v149
    %v283 = vpop.f32.mrf.mxu0
    %v284 = vadd.f32 %v141, %v283
    %v285 = vpop.f32.mrf.mxu0
    %v286 = vpop.f32.mrf.mxu0
    %v287 = vadd.f32 %v141, %v286
    %v288 = vpop.f32.mrf.mxu0
    %289 = vdwg.mxu0
    %v290 = vmax.f32 %v284, 0.0
    %v291 = vmax.f32 %v287, 0.0
    %v292 = vpack.c.bf16 %v291, %v290
    %v293 = vld [vmem:[#allocation7] sm:$0xf]
    %v294 = vld [vmem:[#allocation7 + $0x4] sm:$0xf]
    %v295 = vld [vmem:[#allocation7 + $0x8] sm:$0xf]
    %v296 = vld [vmem:[#allocation7 + $0xc] sm:$0xf]
    %v297 = vld [vmem:[#allocation7 + $0x10] sm:$0xf]
    %v298 = vld [vmem:[#allocation7 + $0x14] sm:$0xf]
    %v299 = vld [vmem:[#allocation7 + $0x18] sm:$0xf]
    %v300 = vld [vmem:[#allocation7 + $0x1c] sm:$0xf]
    %v301 = vld [vmem:[#allocation7 + $0x20] sm:$0xf]
    %v302 = vld [vmem:[#allocation7 + $0x24] sm:$0xf]
    %v303 = vld [vmem:[#allocation7 + $0x28] sm:$0xf]
    %v304 = vld [vmem:[#allocation7 + $0x2c] sm:$0xf]
    %v305 = vld [vmem:[#allocation7 + $0x30] sm:$0xf]
    %v306 = vld [vmem:[#allocation7 + $0x34] sm:$0xf]
    %v307 = vld [vmem:[#allocation7 + $0x38] sm:$0xf]
    %v308 = vld [vmem:[#allocation7 + $0x3c] sm:$0xf]
    %v309 = vld [vmem:[%s4] sm:$0x1]
    %v311 = vlaneseq
    %v312 = vshrl.u32 %v311, 7
    %v313 = vsub.s32 0, %v312
    %v314 = vrot.slane %v309, %v313
    %v332 = vunpack.c.l.b16 %v293
    %v333 = vunpack.c.l.b16 %v294
    %v334 = vunpack.c.l.b16 %v295
    %v335 = vunpack.c.l.b16 %v296
    %v336 = vunpack.c.l.b16 %v297
    %v337 = vunpack.c.l.b16 %v298
    %v338 = vunpack.c.l.b16 %v299
    %v339 = vunpack.c.l.b16 %v300
    %v340 = vunpack.c.l.b16 %v301
    %v341 = vunpack.c.l.b16 %v302
    %v342 = vunpack.c.l.b16 %v303
    %v343 = vunpack.c.l.b16 %v304
    %v344 = vunpack.c.l.b16 %v305
    %v345 = vunpack.c.l.b16 %v306
    %v346 = vunpack.c.l.b16 %v307
    %v347 = vunpack.c.l.b16 %v308
    %v348 = vpack.c.b16 %v333, %v332
    %v349 = vpack.c.b16 %v335, %v334
    %v350 = vpack.c.b16 %v337, %v336
    %v351 = vpack.c.b16 %v339, %v338
    %v352 = vpack.c.b16 %v341, %v340
    %v353 = vpack.c.b16 %v343, %v342
    %v354 = vpack.c.b16 %v345, %v344
    %v355 = vpack.c.b16 %v347, %v346
    %364 = vmatprep.subr.bf16.mxu0 0
    %365 = vmatpush1.bf16.msra.mxu0 %v355
    %366 = vmatprep.subr.bf16.mxu0 0
    %367 = vmatpush1.bf16.msra.mxu0 %v354
    %368 = vmatprep.subr.bf16.mxu0 0
    %369 = vmatpush1.bf16.msra.mxu0 %v353
    %370 = vmatprep.subr.bf16.mxu0 0
    %371 = vmatpush1.bf16.msra.mxu0 %v352
    %372 = vmatprep.subr.bf16.mxu0 0
    %373 = vmatpush1.bf16.msra.mxu0 %v351
    %374 = vmatprep.subr.bf16.mxu0 0
    %375 = vmatpush1.bf16.msra.mxu0 %v350
    %376 = vmatprep.subr.bf16.mxu0 0
    %377 = vmatpush1.bf16.msra.mxu0 %v349
    %378 = vmatprep.subr.bf16.mxu0 0
    %379 = vmatpush1.bf16.msra.mxu0 %v348
    %380 = vmatprep.subr.bf16.mxu0 0
    %381 = vmatpush2.bf16.msra.mxu0 0
    %382 = vmatprep.subr.bf16.mxu0 0
    %383 = vmatpush2.bf16.msra.mxu0 0
    %384 = vmatprep.subr.bf16.mxu0 0
    %385 = vmatpush2.bf16.msra.mxu0 0
    %386 = vmatprep.subr.bf16.mxu0 0
    %387 = vmatpush2.bf16.msra.mxu0 0
    %388 = vmatprep.subr.bf16.mxu0 0
    %389 = vmatpush2.bf16.msra.mxu0 0
    %390 = vmatprep.subr.bf16.mxu0 0
    %391 = vmatpush2.bf16.msra.mxu0 0
    %392 = vmatprep.subr.bf16.mxu0 0
    %393 = vmatpush2.bf16.msra.mxu0 0
    %394 = vmatprep.subr.bf16.mxu0 0
    %395 = vmatpush2.bf16.msra.mxu0 0
    %396 = vmatprep.mubr.bf16.mxu0 0
    %397 = vmatmul.mubr.bf16.gmra.mxu0 %v292
    %v398 = vpop.f32.mrf.mxu0
    %v399 = vadd.f32 %v314, %v398
    %v400 = vpop.f32.mrf.mxu0
    %v401 = vpop.f32.mrf.mxu0
    %v402 = vadd.f32 %v314, %v401
    %v403 = vpop.f32.mrf.mxu0
    %404 = vdwg.mxu0
    %v405 = vmax.f32 %v399, 0.0
    %v406 = vmax.f32 %v402, 0.0
    %v407 = vpack.c.bf16 %v406, %v405
    %v408 = vld [vmem:[#allocation8] sm:$0xf]
    %v409 = vld [vmem:[#allocation8 + $0x4] sm:$0xf]
    %v410 = vld [vmem:[#allocation8 + $0x8] sm:$0xf]
    %v411 = vld [vmem:[#allocation8 + $0xc] sm:$0xf]
    %v412 = vld [vmem:[#allocation8 + $0x10] sm:$0xf]
    %v413 = vld [vmem:[#allocation8 + $0x14] sm:$0xf]
    %v414 = vld [vmem:[#allocation8 + $0x18] sm:$0xf]
    %v415 = vld [vmem:[#allocation8 + $0x1c] sm:$0xf]
    %v416 = vld [vmem:[#allocation8 + $0x20] sm:$0xf]
    %v417 = vld [vmem:[#allocation8 + $0x24] sm:$0xf]
    %v418 = vld [vmem:[#allocation8 + $0x28] sm:$0xf]
    %v419 = vld [vmem:[#allocation8 + $0x2c] sm:$0xf]
    %v420 = vld [vmem:[#allocation8 + $0x30] sm:$0xf]
    %v421 = vld [vmem:[#allocation8 + $0x34] sm:$0xf]
    %v422 = vld [vmem:[#allocation8 + $0x38] sm:$0xf]
    %v423 = vld [vmem:[#allocation8 + $0x3c] sm:$0xf]
    %v424 = vld [vmem:[%s6] sm:$0x1]
    %v426 = vlaneseq
    %v427 = vshrl.u32 %v426, 7
    %v428 = vsub.s32 0, %v427
    %v429 = vrot.slane %v424, %v428
    %v447 = vunpack.c.l.b16 %v408
    %v448 = vunpack.c.l.b16 %v409
    %v449 = vunpack.c.l.b16 %v410
    %v450 = vunpack.c.l.b16 %v411
    %v451 = vunpack.c.l.b16 %v412
    %v452 = vunpack.c.l.b16 %v413
    %v453 = vunpack.c.l.b16 %v414
    %v454 = vunpack.c.l.b16 %v415
    %v455 = vunpack.c.l.b16 %v416
    %v456 = vunpack.c.l.b16 %v417
    %v457 = vunpack.c.l.b16 %v418
    %v458 = vunpack.c.l.b16 %v419
    %v459 = vunpack.c.l.b16 %v420
    %v460 = vunpack.c.l.b16 %v421
    %v461 = vunpack.c.l.b16 %v422
    %v462 = vunpack.c.l.b16 %v423
    %v463 = vpack.c.b16 %v448, %v447
    %v464 = vpack.c.b16 %v450, %v449
    %v465 = vpack.c.b16 %v452, %v451
    %v466 = vpack.c.b16 %v454, %v453
    %v467 = vpack.c.b16 %v456, %v455
    %v468 = vpack.c.b16 %v458, %v457
    %v469 = vpack.c.b16 %v460, %v459
    %v470 = vpack.c.b16 %v462, %v461
    %479 = vmatprep.subr.bf16.mxu0 0
    %480 = vmatpush1.bf16.msra.mxu0 %v470
    %481 = vmatprep.subr.bf16.mxu0 0
    %482 = vmatpush1.bf16.msra.mxu0 %v469
    %483 = vmatprep.subr.bf16.mxu0 0
    %484 = vmatpush1.bf16.msra.mxu0 %v468
    %485 = vmatprep.subr.bf16.mxu0 0
    %486 = vmatpush1.bf16.msra.mxu0 %v467
    %487 = vmatprep.subr.bf16.mxu0 0
    %488 = vmatpush1.bf16.msra.mxu0 %v466
    %489 = vmatprep.subr.bf16.mxu0 0
    %490 = vmatpush1.bf16.msra.mxu0 %v465
    %491 = vmatprep.subr.bf16.mxu0 0
    %492 = vmatpush1.bf16.msra.mxu0 %v464
    %493 = vmatprep.subr.bf16.mxu0 0
    %494 = vmatpush1.bf16.msra.mxu0 %v463
    %495 = vmatprep.subr.bf16.mxu0 0
    %496 = vmatpush2.bf16.msra.mxu0 0
    %497 = vmatprep.subr.bf16.mxu0 0
    %498 = vmatpush2.bf16.msra.mxu0 0
    %499 = vmatprep.subr.bf16.mxu0 0
    %500 = vmatpush2.bf16.msra.mxu0 0
    %501 = vmatprep.subr.bf16.mxu0 0
    %502 = vmatpush2.bf16.msra.mxu0 0
    %503 = vmatprep.subr.bf16.mxu0 0
    %504 = vmatpush2.bf16.msra.mxu0 0
    %505 = vmatprep.subr.bf16.mxu0 0
    %506 = vmatpush2.bf16.msra.mxu0 0
    %507 = vmatprep.subr.bf16.mxu0 0
    %508 = vmatpush2.bf16.msra.mxu0 0
    %509 = vmatprep.subr.bf16.mxu0 0
    %510 = vmatpush2.bf16.msra.mxu0 0
    %511 = vmatprep.mubr.bf16.mxu0 0
    %512 = vmatmul.mubr.bf16.gmra.mxu0 %v407
    %v513 = vpop.f32.mrf.mxu0
    %v514 = vadd.f32 %v429, %v513
    %v515 = vpop.f32.mrf.mxu0
    %v516 = vpop.f32.mrf.mxu0
    %v517 = vadd.f32 %v429, %v516
    %v518 = vpop.f32.mrf.mxu0
    %519 = vdwg.mxu0
    %v520 = vmax.f32 %v514, 0.0
    %v521 = vmax.f32 %v517, 0.0
    %v522 = vpack.c.bf16 %v521, %v520
    %v523 = vld [vmem:[#allocation10] sm:$0xff]
    %v524 = vld [vmem:[#allocation10 + $0x8] sm:$0xff]
    %v525 = vld [vmem:[#allocation10 + $0x10] sm:$0xff]
    %v526 = vld [vmem:[#allocation10 + $0x18] sm:$0xff]
    %v527 = vld [vmem:[#allocation10 + $0x20] sm:$0xff]
    %v528 = vld [vmem:[#allocation10 + $0x28] sm:$0xff]
    %v529 = vld [vmem:[#allocation10 + $0x30] sm:$0xff]
    %v530 = vld [vmem:[#allocation10 + $0x38] sm:$0xff]
    %v531 = vld [vmem:[#allocation10 + $0x40] sm:$0xff]
    %v532 = vld [vmem:[#allocation10 + $0x48] sm:$0xff]
    %v533 = vld [vmem:[#allocation10 + $0x50] sm:$0xff]
    %v534 = vld [vmem:[#allocation10 + $0x58] sm:$0xff]
    %v535 = vld [vmem:[#allocation10 + $0x60] sm:$0xff]
    %v536 = vld [vmem:[#allocation10 + $0x68] sm:$0xff]
    %v537 = vld [vmem:[#allocation10 + $0x70] sm:$0xff]
    %v538 = vld [vmem:[#allocation10 + $0x78] sm:$0xff]
    %v539 = vld [vmem:[%s8] sm:$0x3]
    %v541 = vlaneseq
    %v542 = vshrl.u32 %v541, 7
    %v543 = vsub.s32 0, %v542
    %v544 = vrot.slane %v539, %v543
    %v545 = vlaneseq
    %v546 = vshrl.u32 %v545, 7
    %v547 = vsub.s32 1, %v546
    %v548 = vrot.slane %v539, %v547
    %v567 = vunpack.c.l.b16 %v523
    %v568 = vunpack.c.h.b16 %v523
    %v569 = vunpack.c.l.b16 %v524
    %v570 = vunpack.c.h.b16 %v524
    %v571 = vunpack.c.l.b16 %v525
    %v572 = vunpack.c.h.b16 %v525
    %v573 = vunpack.c.l.b16 %v526
    %v574 = vunpack.c.h.b16 %v526
    %v575 = vunpack.c.l.b16 %v527
    %v576 = vunpack.c.h.b16 %v527
    %v577 = vunpack.c.l.b16 %v528
    %v578 = vunpack.c.h.b16 %v528
    %v579 = vunpack.c.l.b16 %v529
    %v580 = vunpack.c.h.b16 %v529
    %v581 = vunpack.c.l.b16 %v530
    %v582 = vunpack.c.h.b16 %v530
    %v583 = vunpack.c.l.b16 %v531
    %v584 = vunpack.c.h.b16 %v531
    %v585 = vunpack.c.l.b16 %v532
    %v586 = vunpack.c.h.b16 %v532
    %v587 = vunpack.c.l.b16 %v533
    %v588 = vunpack.c.h.b16 %v533
    %v589 = vunpack.c.l.b16 %v534
    %v590 = vunpack.c.h.b16 %v534
    %v591 = vunpack.c.l.b16 %v535
    %v592 = vunpack.c.h.b16 %v535
    %v593 = vunpack.c.l.b16 %v536
    %v594 = vunpack.c.h.b16 %v536
    %v595 = vunpack.c.l.b16 %v537
    %v596 = vunpack.c.h.b16 %v537
    %v597 = vunpack.c.l.b16 %v538
    %v598 = vunpack.c.h.b16 %v538
    %v599 = vpack.c.b16 %v569, %v567
    %v600 = vpack.c.b16 %v570, %v568
    %v601 = vpack.c.b16 %v573, %v571
    %v602 = vpack.c.b16 %v574, %v572
    %v603 = vpack.c.b16 %v577, %v575
    %v604 = vpack.c.b16 %v578, %v576
    %v605 = vpack.c.b16 %v581, %v579
    %v606 = vpack.c.b16 %v582, %v580
    %v607 = vpack.c.b16 %v585, %v583
    %v608 = vpack.c.b16 %v586, %v584
    %v609 = vpack.c.b16 %v589, %v587
    %v610 = vpack.c.b16 %v590, %v588
    %v611 = vpack.c.b16 %v593, %v591
    %v612 = vpack.c.b16 %v594, %v592
    %v613 = vpack.c.b16 %v597, %v595
    %v614 = vpack.c.b16 %v598, %v596
    %631 = vmatprep.subr.bf16.mxu0 %v614
    %632 = vmatpush1.bf16.msra.mxu0 %v613
    %633 = vmatprep.subr.bf16.mxu0 %v612
    %634 = vmatpush1.bf16.msra.mxu0 %v611
    %635 = vmatprep.subr.bf16.mxu0 %v610
    %636 = vmatpush1.bf16.msra.mxu0 %v609
    %637 = vmatprep.subr.bf16.mxu0 %v608
    %638 = vmatpush1.bf16.msra.mxu0 %v607
    %639 = vmatprep.subr.bf16.mxu0 %v606
    %640 = vmatpush1.bf16.msra.mxu0 %v605
    %641 = vmatprep.subr.bf16.mxu0 %v604
    %642 = vmatpush1.bf16.msra.mxu0 %v603
    %643 = vmatprep.subr.bf16.mxu0 %v602
    %644 = vmatpush1.bf16.msra.mxu0 %v601
    %645 = vmatprep.subr.bf16.mxu0 %v600
    %646 = vmatpush1.bf16.msra.mxu0 %v599
    %647 = vmatprep.subr.bf16.mxu0 0
    %648 = vmatpush2.bf16.msra.mxu0 0
    %649 = vmatprep.subr.bf16.mxu0 0
    %650 = vmatpush2.bf16.msra.mxu0 0
    %651 = vmatprep.subr.bf16.mxu0 0
    %652 = vmatpush2.bf16.msra.mxu0 0
    %653 = vmatprep.subr.bf16.mxu0 0
    %654 = vmatpush2.bf16.msra.mxu0 0
    %655 = vmatprep.subr.bf16.mxu0 0
    %656 = vmatpush2.bf16.msra.mxu0 0
    %657 = vmatprep.subr.bf16.mxu0 0
    %658 = vmatpush2.bf16.msra.mxu0 0
    %659 = vmatprep.subr.bf16.mxu0 0
    %660 = vmatpush2.bf16.msra.mxu0 0
    %661 = vmatprep.subr.bf16.mxu0 0
    %662 = vmatpush2.bf16.msra.mxu0 0
    %663 = vmatprep.mubr.bf16.mxu0 0
    %664 = vmatmul.mubr.bf16.gmra.mxu0 %v522
    %v665 = vpop.f32.mrf.mxu0
    %v666 = vadd.f32 %v544, %v665
    %v667 = vpop.f32.mrf.mxu0
    %v668 = vadd.f32 %v548, %v667
    %v669 = vpop.f32.mrf.mxu0
    %v670 = vadd.f32 %v544, %v669
    %v671 = vpop.f32.mrf.mxu0
    %v672 = vadd.f32 %v548, %v671
    %673 = vdwg.mxu0
    %v674 = vmax.f32 %v666, 0.0
    %v675 = vmax.f32 %v668, 0.0
    %v676 = vmax.f32 %v670, 0.0
    %v677 = vmax.f32 %v672, 0.0
    %678 = vst [vmem:[#allocation11] sm:$0xff] %v674
    %679 = vst [vmem:[#allocation11 + $0x8] sm:$0xff] %v675
    %680 = vst [vmem:[#allocation11 + $0x10] sm:$0xff] %v676
    %681 = vst [vmem:[#allocation11 + $0x18] sm:$0xff] %v677
    // Predicated region
    $region58: #{tpu_custom_call.1} parent=1 // pred_check
      _
    $region59: #{tpu_custom_call.1} parent=1 // pred_check_branch
      %683 = sbr.rel (0) target = $region61
    $region60: #{tpu_custom_call.1} parent=1 // pred_region
      %s685 = ssub.s32 512, 512
      %686 = vsyncadd [#allocation4], %s685
      %s687 = sshll.u32 [#allocation11], 4
      %s688 = int_to_ptr.vmem [resolvable:$true] %s687
      %693 = dma.vmem_to_hbm [thread:$0]  %s688, 512, %s9, [#allocation4], 256, 256, 16
    $region61: #{tpu_custom_call.1} parent=1 // pred_fallthru
      _
    // Predicated region
    $region62: #{tpu_custom_call.1} parent=1 // pred_check
      _
    $region63: #{tpu_custom_call.1} parent=1 // pred_check_branch
      %695 = sbr.rel (0) target = $region65
    $region64: #{tpu_custom_call.1} parent=1 // pred_region
      %696 = dma.done [#allocation4], 512
    $region65: #{tpu_custom_call.1} parent=1 // pred_fallthru
      _
    %697 = vsyncpa [#allocation3], 1
    %698 = vsyncpa [#allocation6], 1
    %699 = vsyncpa [#allocation9], 1
    %700 = vsyncpa [#allocation4], 1

// kernel: tpu_custom_call.1
$region0: #{tpu_custom_call.1}
  #allocation0 [shape = 'u32[]', space=smem, size = 0x4, offset = 0x4, fixed_abs, tag = 'smem constant byte address 0x4 - core index']
  #allocation1 [shape = 'u32[144,128]{1,0:T(1,128)}', space=vmem, size = 0x12000, scoped, tag = 'internal scratch']
  %s0 = inlined_call_operand.hbm [shape: bf16[16,256], index: 0, kind: input, shape index: {}]
  %s1 = inlined_call_operand.hbm [shape: bf16[256,128], index: 1, kind: input, shape index: {}]
  %s2 = inlined_call_operand.vmem [shape: f32[1,128], index: 2, kind: input, shape index: {}]
  %s3 = inlined_call_operand.hbm [shape: bf16[128,128], index: 3, kind: input, shape index: {}]
  %s4 = inlined_call_operand.vmem [shape: f32[1,128], index: 4, kind: input, shape index: {}]
  %s5 = inlined_call_operand.hbm [shape: bf16[128,128], index: 5, kind: input, shape index: {}]
  %s6 = inlined_call_operand.vmem [shape: f32[1,128], index: 6, kind: input, shape index: {}]
  %s7 = inlined_call_operand.hbm [shape: bf16[128,256], index: 7, kind: input, shape index: {}]
  %s8 = inlined_call_operand.vmem [shape: f32[1,256], index: 8, kind: input, shape index: {}]
  %s9 = inlined_call_operand.hbm [shape: f32[16,256], index: 9, kind: output, shape index: {}]
  %s10 = sld [smem:[#allocation0]]
  $region66: #{tpu_custom_call.1} parent=0
    _
  %s12 = ssub.s32 1, %s10
  %s13 = scalar_select 0, %s12, %s10
  $region1: #{tpu_custom_call.1} parent=0
    #allocation2 [shape = 'u8[8192]{0}', space=vmem, size = 0x2000, scoped, tag = 'input window, operand 0, single buffered']
    #allocation3 [shape = 's32[1]{0}', space=sflag, size = 0x4, scoped, tag = 'scoped memory for tpu_custom_call.1']
    #allocation4 [shape = 's32[1]{0}', space=sflag, size = 0x4, scoped, tag = 'scoped memory for tpu_custom_call.1']
    #allocation5 [shape = 'u8[65536]{0}', space=vmem, size = 0x10000, scoped, tag = 'input window, operand 1, single buffered']
    #allocation6 [shape = 's32[1]{0}', space=sflag, size = 0x4, scoped, tag = 'scoped memory for tpu_custom_call.1']
    #allocation7 [shape = 'u8[32768]{0}', space=vmem, size = 0x8000, scoped, tag = 'input window, operand 3, single buffered']
    #allocation8 [shape = 'u8[32768]{0}', space=vmem, size = 0x8000, scoped, tag = 'input window, operand 5, single buffered']
    #allocation9 [shape = 's32[1]{0}', space=sflag, size = 0x4, scoped, tag = 'scoped memory for tpu_custom_call.1']
    #allocation10 [shape = 'u8[65536]{0}', space=vmem, size = 0x10000, scoped, tag = 'input window, operand 7, single buffered']
    #allocation11 [shape = 'u8[16384]{0}', space=vmem, size = 0x4000, scoped, tag = 'output window, operand 0, single buffered']
    %14 = vsyncpa [#allocation3], 0
    %15 = vsyncpa [#allocation6], 0
    %16 = vsyncpa [#allocation9], 0
    %17 = vsyncpa [#allocation4], 0
    // Predicated region
    $region2: #{tpu_custom_call.1} parent=1 // pred_check
      _
    $region3: #{tpu_custom_call.1} parent=1 // pred_check_branch
      %19 = sbr.rel (0) target = $region5
    $region4: #{tpu_custom_call.1} parent=1 // pred_region
      %s21 = ssub.s32 256, 256
      %22 = vsyncadd [#allocation3], %s21
      %s23 = sshll.u32 [#allocation2], 4
      %s24 = int_to_ptr.vmem [resolvable:$true] %s23
      %29 = dma.hbm_to_vmem [thread:$0]  %s0, 256, %s24, [#allocation3], 128, 128, 8
    $region5: #{tpu_custom_call.1} parent=1 // pred_fallthru
      _
    // Predicated region
    $region6: #{tpu_custom_call.1} parent=1 // pred_check
      _
    $region7: #{tpu_custom_call.1} parent=1 // pred_check_branch
      %31 = sbr.rel (0) target = $region9
    $region8: #{tpu_custom_call.1} parent=1 // pred_region
      %s33 = ssub.s32 2048, 2048
      %34 = vsyncadd [#allocation6], %s33
      %s35 = sshll.u32 [#allocation5], 4
      %s36 = int_to_ptr.vmem [resolvable:$true] %s35
      %41 = dma.hbm_to_vmem [thread:$0]  %s1, 2048, %s36, [#allocation6], 64, 64, 4
    $region9: #{tpu_custom_call.1} parent=1 // pred_fallthru
      _
    // Predicated region
    $region10: #{tpu_custom_call.1} parent=1 // pred_check
      _
    $region11: #{tpu_custom_call.1} parent=1 // pred_check_branch
      %43 = sbr.rel (0) target = $region13
    $region12: #{tpu_custom_call.1} parent=1 // pred_region
      _
    $region13: #{tpu_custom_call.1} parent=1 // pred_fallthru
      _
    // Predicated region
    $region14: #{tpu_custom_call.1} parent=1 // pred_check
      _
    $region15: #{tpu_custom_call.1} parent=1 // pred_check_branch
      %45 = sbr.rel (0) target = $region17
    $region16: #{tpu_custom_call.1} parent=1 // pred_region
      %s47 = ssub.s32 1024, 1024
      %48 = vsyncadd [#allocation6], %s47
      %s49 = sshll.u32 [#allocation7], 4
      %s50 = int_to_ptr.vmem [resolvable:$true] %s49
      %55 = dma.hbm_to_vmem [thread:$0]  %s3, 1024, %s50, [#allocation6], 64, 64, 4
    $region17: #{tpu_custom_call.1} parent=1 // pred_fallthru
      _
    // Predicated region
    $region18: #{tpu_custom_call.1} parent=1 // pred_check
      _
    $region19: #{tpu_custom_call.1} parent=1 // pred_check_branch
      %57 = sbr.rel (0) target = $region21
    $region20: #{tpu_custom_call.1} parent=1 // pred_region
      _
    $region21: #{tpu_custom_call.1} parent=1 // pred_fallthru
      _
    // Predicated region
    $region22: #{tpu_custom_call.1} parent=1 // pred_check
      _
    $region23: #{tpu_custom_call.1} parent=1 // pred_check_branch
      %59 = sbr.rel (0) target = $region25
    $region24: #{tpu_custom_call.1} parent=1 // pred_region
      %s61 = ssub.s32 1024, 1024
      %62 = vsyncadd [#allocation9], %s61
      %s63 = sshll.u32 [#allocation8], 4
      %s64 = int_to_ptr.vmem [resolvable:$true] %s63
      %69 = dma.hbm_to_vmem [thread:$0]  %s5, 1024, %s64, [#allocation9], 64, 64, 4
    $region25: #{tpu_custom_call.1} parent=1 // pred_fallthru
      _
    // Predicated region
    $region26: #{tpu_custom_call.1} parent=1 // pred_check
      _
    $region27: #{tpu_custom_call.1} parent=1 // pred_check_branch
      %71 = sbr.rel (0) target = $region29
    $region28: #{tpu_custom_call.1} parent=1 // pred_region
      _
    $region29: #{tpu_custom_call.1} parent=1 // pred_fallthru
      _
    // Predicated region
    $region30: #{tpu_custom_call.1} parent=1 // pred_check
      _
    $region31: #{tpu_custom_call.1} parent=1 // pred_check_branch
      %73 = sbr.rel (0) target = $region33
    $region32: #{tpu_custom_call.1} parent=1 // pred_region
      %s75 = ssub.s32 2048, 2048
      %76 = vsyncadd [#allocation9], %s75
      %s77 = sshll.u32 [#allocation10], 4
      %s78 = int_to_ptr.vmem [resolvable:$true] %s77
      %83 = dma.hbm_to_vmem [thread:$0]  %s7, 2048, %s78, [#allocation9], 128, 128, 8
    $region33: #{tpu_custom_call.1} parent=1 // pred_fallthru
      _
    // Predicated region
    $region34: #{tpu_custom_call.1} parent=1 // pred_check
      _
    $region35: #{tpu_custom_call.1} parent=1 // pred_check_branch
      %85 = sbr.rel (0) target = $region37
    $region36: #{tpu_custom_call.1} parent=1 // pred_region
      _
    $region37: #{tpu_custom_call.1} parent=1 // pred_fallthru
      _
    // Predicated region
    $region38: #{tpu_custom_call.1} parent=1 // pred_check
      _
    $region39: #{tpu_custom_call.1} parent=1 // pred_check_branch
      %87 = sbr.rel (0) target = $region41
    $region40: #{tpu_custom_call.1} parent=1 // pred_region
      %88 = dma.done [#allocation3], 256
    $region41: #{tpu_custom_call.1} parent=1 // pred_fallthru
      _
    // Predicated region
    $region42: #{tpu_custom_call.1} parent=1 // pred_check
      _
    $region43: #{tpu_custom_call.1} parent=1 // pred_check_branch
      %90 = sbr.rel (0) target = $region45
    $region44: #{tpu_custom_call.1} parent=1 // pred_region
      %91 = dma.done [#allocation6], 2048
    $region45: #{tpu_custom_call.1} parent=1 // pred_fallthru
      _
    // Predicated region
    $region46: #{tpu_custom_call.1} parent=1 // pred_check
      _
    $region47: #{tpu_custom_call.1} parent=1 // pred_check_branch
      %93 = sbr.rel (0) target = $region49
    $region48: #{tpu_custom_call.1} parent=1 // pred_region
      %94 = dma.done [#allocation6], 1024
    $region49: #{tpu_custom_call.1} parent=1 // pred_fallthru
      _
    // Predicated region
    $region50: #{tpu_custom_call.1} parent=1 // pred_check
      _
    $region51: #{tpu_custom_call.1} parent=1 // pred_check_branch
      %96 = sbr.rel (0) target = $region53
    $region52: #{tpu_custom_call.1} parent=1 // pred_region
      %97 = dma.done [#allocation9], 1024
    $region53: #{tpu_custom_call.1} parent=1 // pred_fallthru
      _
    // Predicated region
    $region54: #{tpu_custom_call.1} parent=1 // pred_check
      _
    $region55: #{tpu_custom_call.1} parent=1 // pred_check_branch
      %99 = sbr.rel (0) target = $region57
    $region56: #{tpu_custom_call.1} parent=1 // pred_region
      %100 = dma.done [#allocation9], 2048
    $region57: #{tpu_custom_call.1} parent=1 // pred_fallthru
      _
    %v102 = vld [vmem:[#allocation2] sm:$0xff]
    %v103 = vld [vmem:[#allocation2 + $0x8] sm:$0xff]
    %v104 = vld [vmem:[#allocation5] sm:$0xf]
    %v105 = vld [vmem:[#allocation5 + $0x4] sm:$0xf]
    %v106 = vld [vmem:[#allocation5 + $0x8] sm:$0xf]
    %v107 = vld [vmem:[#allocation5 + $0xc] sm:$0xf]
    %v108 = vld [vmem:[#allocation5 + $0x10] sm:$0xf]
    %v109 = vld [vmem:[#allocation5 + $0x14] sm:$0xf]
    %v110 = vld [vmem:[#allocation5 + $0x18] sm:$0xf]
    %v111 = vld [vmem:[#allocation5 + $0x1c] sm:$0xf]
    %v112 = vld [vmem:[#allocation5 + $0x20] sm:$0xf]
    %v113 = vld [vmem:[#allocation5 + $0x24] sm:$0xf]
    %v114 = vld [vmem:[#allocation5 + $0x28] sm:$0xf]
    %v115 = vld [vmem:[#allocation5 + $0x2c] sm:$0xf]
    %v116 = vld [vmem:[#allocation5 + $0x30] sm:$0xf]
    %v117 = vld [vmem:[#allocation5 + $0x34] sm:$0xf]
    %v118 = vld [vmem:[#allocation5 + $0x38] sm:$0xf]
    %v119 = vld [vmem:[#allocation5 + $0x3c] sm:$0xf]
    %v120 = vld [vmem:[#allocation5 + $0x40] sm:$0xf]
    %v121 = vld [vmem:[#allocation5 + $0x44] sm:$0xf]
    %v122 = vld [vmem:[#allocation5 + $0x48] sm:$0xf]
    %v123 = vld [vmem:[#allocation5 + $0x4c] sm:$0xf]
    %v124 = vld [vmem:[#allocation5 + $0x50] sm:$0xf]
    %v125 = vld [vmem:[#allocation5 + $0x54] sm:$0xf]
    %v126 = vld [vmem:[#allocation5 + $0x58] sm:$0xf]
    %v127 = vld [vmem:[#allocation5 + $0x5c] sm:$0xf]
    %v128 = vld [vmem:[#allocation5 + $0x60] sm:$0xf]
    %v129 = vld [vmem:[#allocation5 + $0x64] sm:$0xf]
    %v130 = vld [vmem:[#allocation5 + $0x68] sm:$0xf]
    %v131 = vld [vmem:[#allocation5 + $0x6c] sm:$0xf]
    %v132 = vld [vmem:[#allocation5 + $0x70] sm:$0xf]
    %v133 = vld [vmem:[#allocation5 + $0x74] sm:$0xf]
    %v134 = vld [vmem:[#allocation5 + $0x78] sm:$0xf]
    %v135 = vld [vmem:[#allocation5 + $0x7c] sm:$0xf]
    %v136 = vld [vmem:[%s2] sm:$0x1]
    %v138 = vlaneseq
    %v139 = vshrl.u32 %v138, 7
    %v140 = vsub.s32 0, %v139
    %v141 = vrot.slane %v136, %v140
    %v145 = vunpack.c.l.b16 %v102
    %v146 = vunpack.c.h.b16 %v102
    %v147 = vunpack.c.l.b16 %v103
    %v148 = vunpack.c.h.b16 %v103
    %v149 = vpack.c.b16 %v147, %v145
    %v150 = vpack.c.b16 %v148, %v146
    %v185 = vunpack.c.l.b16 %v104
    %v186 = vunpack.c.l.b16 %v105
    %v187 = vunpack.c.l.b16 %v106
    %v188 = vunpack.c.l.b16 %v107
    %v189 = vunpack.c.l.b16 %v108
    %v190 = vunpack.c.l.b16 %v109
    %v191 = vunpack.c.l.b16 %v110
    %v192 = vunpack.c.l.b16 %v111
    %v193 = vunpack.c.l.b16 %v112
    %v194 = vunpack.c.l.b16 %v113
    %v195 = vunpack.c.l.b16 %v114
    %v196 = vunpack.c.l.b16 %v115
    %v197 = vunpack.c.l.b16 %v116
    %v198 = vunpack.c.l.b16 %v117
    %v199 = vunpack.c.l.b16 %v118
    %v200 = vunpack.c.l.b16 %v119
    %v201 = vunpack.c.l.b16 %v120
    %v202 = vunpack.c.l.b16 %v121
    %v203 = vunpack.c.l.b16 %v122
    %v204 = vunpack.c.l.b16 %v123
    %v205 = vunpack.c.l.b16 %v124
    %v206 = vunpack.c.l.b16 %v125
    %v207 = vunpack.c.l.b16 %v126
    %v208 = vunpack.c.l.b16 %v127
    %v209 = vunpack.c.l.b16 %v128
    %v210 = vunpack.c.l.b16 %v129
    %v211 = vunpack.c.l.b16 %v130
    %v212 = vunpack.c.l.b16 %v131
    %v213 = vunpack.c.l.b16 %v132
    %v214 = vunpack.c.l.b16 %v133
    %v215 = vunpack.c.l.b16 %v134
    %v216 = vunpack.c.l.b16 %v135
    %v217 = vpack.c.b16 %v186, %v185
    %v218 = vpack.c.b16 %v188, %v187
    %v219 = vpack.c.b16 %v190, %v189
    %v220 = vpack.c.b16 %v192, %v191
    %v221 = vpack.c.b16 %v194, %v193
    %v222 = vpack.c.b16 %v196, %v195
    %v223 = vpack.c.b16 %v198, %v197
    %v224 = vpack.c.b16 %v200, %v199
    %v225 = vpack.c.b16 %v202, %v201
    %v226 = vpack.c.b16 %v204, %v203
    %v227 = vpack.c.b16 %v206, %v205
    %v228 = vpack.c.b16 %v208, %v207
    %v229 = vpack.c.b16 %v210, %v209
    %v230 = vpack.c.b16 %v212, %v211
    %v231 = vpack.c.b16 %v214, %v213
    %v232 = vpack.c.b16 %v216, %v215
    %249 = vmatprep.subr.bf16.mxu0 0
    %250 = vmatpush1.bf16.msra.mxu0 %v224
    %251 = vmatprep.subr.bf16.mxu0 0
    %252 = vmatpush1.bf16.msra.mxu0 %v223
    %253 = vmatprep.subr.bf16.mxu0 0
    %254 = vmatpush1.bf16.msra.mxu0 %v222
    %255 = vmatprep.subr.bf16.mxu0 0
    %256 = vmatpush1.bf16.msra.mxu0 %v221
    %257 = vmatprep.subr.bf16.mxu0 0
    %258 = vmatpush1.bf16.msra.mxu0 %v220
    %259 = vmatprep.subr.bf16.mxu0 0
    %260 = vmatpush1.bf16.msra.mxu0 %v219
    %261 = vmatprep.subr.bf16.mxu0 0
    %262 = vmatpush1.bf16.msra.mxu0 %v218
    %263 = vmatprep.subr.bf16.mxu0 0
    %264 = vmatpush1.bf16.msra.mxu0 %v217
    %265 = vmatprep.subr.bf16.mxu0 0
    %266 = vmatpush2.bf16.msra.mxu0 %v232
    %267 = vmatprep.subr.bf16.mxu0 0
    %268 = vmatpush2.bf16.msra.mxu0 %v231
    %269 = vmatprep.subr.bf16.mxu0 0
    %270 = vmatpush2.bf16.msra.mxu0 %v230
    %271 = vmatprep.subr.bf16.mxu0 0
    %272 = vmatpush2.bf16.msra.mxu0 %v229
    %273 = vmatprep.subr.bf16.mxu0 0
    %274 = vmatpush2.bf16.msra.mxu0 %v228
    %275 = vmatprep.subr.bf16.mxu0 0
    %276 = vmatpush2.bf16.msra.mxu0 %v227
    %277 = vmatprep.subr.bf16.mxu0 0
    %278 = vmatpush2.bf16.msra.mxu0 %v226
    %279 = vmatprep.subr.bf16.mxu0 0
    %280 = vmatpush2.bf16.msra.mxu0 %v225
    %281 = vmatprep.mubr.bf16.mxu0 %v150
    %282 = vmatmul.mubr.bf16.gmra.mxu0 %v149
    %v283 = vpop.f32.mrf.mxu0
    %v284 = vadd.f32 %v141, %v283
    %v285 = vpop.f32.mrf.mxu0
    %v286 = vpop.f32.mrf.mxu0
    %v287 = vadd.f32 %v141, %v286
    %v288 = vpop.f32.mrf.mxu0
    %289 = vdwg.mxu0
    %v290 = vmax.f32 %v284, 0.0
    %v291 = vmax.f32 %v287, 0.0
    %v292 = vpack.c.bf16 %v291, %v290
    %v293 = vld [vmem:[#allocation7] sm:$0xf]
    %v294 = vld [vmem:[#allocation7 + $0x4] sm:$0xf]
    %v295 = vld [vmem:[#allocation7 + $0x8] sm:$0xf]
    %v296 = vld [vmem:[#allocation7 + $0xc] sm:$0xf]
    %v297 = vld [vmem:[#allocation7 + $0x10] sm:$0xf]
    %v298 = vld [vmem:[#allocation7 + $0x14] sm:$0xf]
    %v299 = vld [vmem:[#allocation7 + $0x18] sm:$0xf]
    %v300 = vld [vmem:[#allocation7 + $0x1c] sm:$0xf]
    %v301 = vld [vmem:[#allocation7 + $0x20] sm:$0xf]
    %v302 = vld [vmem:[#allocation7 + $0x24] sm:$0xf]
    %v303 = vld [vmem:[#allocation7 + $0x28] sm:$0xf]
    %v304 = vld [vmem:[#allocation7 + $0x2c] sm:$0xf]
    %v305 = vld [vmem:[#allocation7 + $0x30] sm:$0xf]
    %v306 = vld [vmem:[#allocation7 + $0x34] sm:$0xf]
    %v307 = vld [vmem:[#allocation7 + $0x38] sm:$0xf]
    %v308 = vld [vmem:[#allocation7 + $0x3c] sm:$0xf]
    %v309 = vld [vmem:[%s4] sm:$0x1]
    %v311 = vlaneseq
    %v312 = vshrl.u32 %v311, 7
    %v313 = vsub.s32 0, %v312
    %v314 = vrot.slane %v309, %v313
    %v332 = vunpack.c.l.b16 %v293
    %v333 = vunpack.c.l.b16 %v294
    %v334 = vunpack.c.l.b16 %v295
    %v335 = vunpack.c.l.b16 %v296
    %v336 = vunpack.c.l.b16 %v297
    %v337 = vunpack.c.l.b16 %v298
    %v338 = vunpack.c.l.b16 %v299
    %v339 = vunpack.c.l.b16 %v300
    %v340 = vunpack.c.l.b16 %v301
    %v341 = vunpack.c.l.b16 %v302
    %v342 = vunpack.c.l.b16 %v303
    %v343 = vunpack.c.l.b16 %v304
    %v344 = vunpack.c.l.b16 %v305
    %v345 = vunpack.c.l.b16 %v306
    %v346 = vunpack.c.l.b16 %v307
    %v347 = vunpack.c.l.b16 %v308
    %v348 = vpack.c.b16 %v333, %v332
    %v349 = vpack.c.b16 %v335, %v334
    %v350 = vpack.c.b16 %v337, %v336
    %v351 = vpack.c.b16 %v339, %v338
    %v352 = vpack.c.b16 %v341, %v340
    %v353 = vpack.c.b16 %v343, %v342
    %v354 = vpack.c.b16 %v345, %v344
    %v355 = vpack.c.b16 %v347, %v346
    %364 = vmatprep.subr.bf16.mxu0 0
    %365 = vmatpush1.bf16.msra.mxu0 %v355
    %366 = vmatprep.subr.bf16.mxu0 0
    %367 = vmatpush1.bf16.msra.mxu0 %v354
    %368 = vmatprep.subr.bf16.mxu0 0
    %369 = vmatpush1.bf16.msra.mxu0 %v353
    %370 = vmatprep.subr.bf16.mxu0 0
    %371 = vmatpush1.bf16.msra.mxu0 %v352
    %372 = vmatprep.subr.bf16.mxu0 0
    %373 = vmatpush1.bf16.msra.mxu0 %v351
    %374 = vmatprep.subr.bf16.mxu0 0
    %375 = vmatpush1.bf16.msra.mxu0 %v350
    %376 = vmatprep.subr.bf16.mxu0 0
    %377 = vmatpush1.bf16.msra.mxu0 %v349
    %378 = vmatprep.subr.bf16.mxu0 0
    %379 = vmatpush1.bf16.msra.mxu0 %v348
    %380 = vmatprep.subr.bf16.mxu0 0
    %381 = vmatpush2.bf16.msra.mxu0 0
    %382 = vmatprep.subr.bf16.mxu0 0
    %383 = vmatpush2.bf16.msra.mxu0 0
    %384 = vmatprep.subr.bf16.mxu0 0
    %385 = vmatpush2.bf16.msra.mxu0 0
    %386 = vmatprep.subr.bf16.mxu0 0
    %387 = vmatpush2.bf16.msra.mxu0 0
    %388 = vmatprep.subr.bf16.mxu0 0
    %389 = vmatpush2.bf16.msra.mxu0 0
    %390 = vmatprep.subr.bf16.mxu0 0
    %391 = vmatpush2.bf16.msra.mxu0 0
    %392 = vmatprep.subr.bf16.mxu0 0
    %393 = vmatpush2.bf16.msra.mxu0 0
    %394 = vmatprep.subr.bf16.mxu0 0
    %395 = vmatpush2.bf16.msra.mxu0 0
    %396 = vmatprep.mubr.bf16.mxu0 0
    %397 = vmatmul.mubr.bf16.gmra.mxu0 %v292
    %v398 = vpop.f32.mrf.mxu0
    %v399 = vadd.f32 %v314, %v398
    %v400 = vpop.f32.mrf.mxu0
    %v401 = vpop.f32.mrf.mxu0
    %v402 = vadd.f32 %v314, %v401
    %v403 = vpop.f32.mrf.mxu0
    %404 = vdwg.mxu0
    %v405 = vmax.f32 %v399, 0.0
    %v406 = vmax.f32 %v402, 0.0
    %v407 = vpack.c.bf16 %v406, %v405
    %v408 = vld [vmem:[#allocation8] sm:$0xf]
    %v409 = vld [vmem:[#allocation8 + $0x4] sm:$0xf]
    %v410 = vld [vmem:[#allocation8 + $0x8] sm:$0xf]
    %v411 = vld [vmem:[#allocation8 + $0xc] sm:$0xf]
    %v412 = vld [vmem:[#allocation8 + $0x10] sm:$0xf]
    %v413 = vld [vmem:[#allocation8 + $0x14] sm:$0xf]
    %v414 = vld [vmem:[#allocation8 + $0x18] sm:$0xf]
    %v415 = vld [vmem:[#allocation8 + $0x1c] sm:$0xf]
    %v416 = vld [vmem:[#allocation8 + $0x20] sm:$0xf]
    %v417 = vld [vmem:[#allocation8 + $0x24] sm:$0xf]
    %v418 = vld [vmem:[#allocation8 + $0x28] sm:$0xf]
    %v419 = vld [vmem:[#allocation8 + $0x2c] sm:$0xf]
    %v420 = vld [vmem:[#allocation8 + $0x30] sm:$0xf]
    %v421 = vld [vmem:[#allocation8 + $0x34] sm:$0xf]
    %v422 = vld [vmem:[#allocation8 + $0x38] sm:$0xf]
    %v423 = vld [vmem:[#allocation8 + $0x3c] sm:$0xf]
    %v424 = vld [vmem:[%s6] sm:$0x1]
    %v426 = vlaneseq
    %v427 = vshrl.u32 %v426, 7
    %v428 = vsub.s32 0, %v427
    %v429 = vrot.slane %v424, %v428
    %v447 = vunpack.c.l.b16 %v408
    %v448 = vunpack.c.l.b16 %v409
    %v449 = vunpack.c.l.b16 %v410
    %v450 = vunpack.c.l.b16 %v411
    %v451 = vunpack.c.l.b16 %v412
    %v452 = vunpack.c.l.b16 %v413
    %v453 = vunpack.c.l.b16 %v414
    %v454 = vunpack.c.l.b16 %v415
    %v455 = vunpack.c.l.b16 %v416
    %v456 = vunpack.c.l.b16 %v417
    %v457 = vunpack.c.l.b16 %v418
    %v458 = vunpack.c.l.b16 %v419
    %v459 = vunpack.c.l.b16 %v420
    %v460 = vunpack.c.l.b16 %v421
    %v461 = vunpack.c.l.b16 %v422
    %v462 = vunpack.c.l.b16 %v423
    %v463 = vpack.c.b16 %v448, %v447
    %v464 = vpack.c.b16 %v450, %v449
    %v465 = vpack.c.b16 %v452, %v451
    %v466 = vpack.c.b16 %v454, %v453
    %v467 = vpack.c.b16 %v456, %v455
    %v468 = vpack.c.b16 %v458, %v457
    %v469 = vpack.c.b16 %v460, %v459
    %v470 = vpack.c.b16 %v462, %v461
    %479 = vmatprep.subr.bf16.mxu0 0
    %480 = vmatpush1.bf16.msra.mxu0 %v470
    %481 = vmatprep.subr.bf16.mxu0 0
    %482 = vmatpush1.bf16.msra.mxu0 %v469
    %483 = vmatprep.subr.bf16.mxu0 0
    %484 = vmatpush1.bf16.msra.mxu0 %v468
    %485 = vmatprep.subr.bf16.mxu0 0
    %486 = vmatpush1.bf16.msra.mxu0 %v467
    %487 = vmatprep.subr.bf16.mxu0 0
    %488 = vmatpush1.bf16.msra.mxu0 %v466
    %489 = vmatprep.subr.bf16.mxu0 0
    %490 = vmatpush1.bf16.msra.mxu0 %v465
    %491 = vmatprep.subr.bf16.mxu0 0
    %492 = vmatpush1.bf16.msra.mxu0 %v464
    %493 = vmatprep.subr.bf16.mxu0 0
    %494 = vmatpush1.bf16.msra.mxu0 %v463
    %495 = vmatprep.subr.bf16.mxu0 0
    %496 = vmatpush2.bf16.msra.mxu0 0
    %497 = vmatprep.subr.bf16.mxu0 0
    %498 = vmatpush2.bf16.msra.mxu0 0
    %499 = vmatprep.subr.bf16.mxu0 0
    %500 = vmatpush2.bf16.msra.mxu0 0
    %501 = vmatprep.subr.bf16.mxu0 0
    %502 = vmatpush2.bf16.msra.mxu0 0
    %503 = vmatprep.subr.bf16.mxu0 0
    %504 = vmatpush2.bf16.msra.mxu0 0
    %505 = vmatprep.subr.bf16.mxu0 0
    %506 = vmatpush2.bf16.msra.mxu0 0
    %507 = vmatprep.subr.bf16.mxu0 0
    %508 = vmatpush2.bf16.msra.mxu0 0
    %509 = vmatprep.subr.bf16.mxu0 0
    %510 = vmatpush2.bf16.msra.mxu0 0
    %511 = vmatprep.mubr.bf16.mxu0 0
    %512 = vmatmul.mubr.bf16.gmra.mxu0 %v407
    %v513 = vpop.f32.mrf.mxu0
    %v514 = vadd.f32 %v429, %v513
    %v515 = vpop.f32.mrf.mxu0
    %v516 = vpop.f32.mrf.mxu0
    %v517 = vadd.f32 %v429, %v516
    %v518 = vpop.f32.mrf.mxu0
    %519 = vdwg.mxu0
    %v520 = vmax.f32 %v514, 0.0
    %v521 = vmax.f32 %v517, 0.0
    %v522 = vpack.c.bf16 %v521, %v520
    %v523 = vld [vmem:[#allocation10] sm:$0xff]
    %v524 = vld [vmem:[#allocation10 + $0x8] sm:$0xff]
    %v525 = vld [vmem:[#allocation10 + $0x10] sm:$0xff]
    %v526 = vld [vmem:[#allocation10 + $0x18] sm:$0xff]
    %v527 = vld [vmem:[#allocation10 + $0x20] sm:$0xff]
    %v528 = vld [vmem:[#allocation10 + $0x28] sm:$0xff]
    %v529 = vld [vmem:[#allocation10 + $0x30] sm:$0xff]
    %v530 = vld [vmem:[#allocation10 + $0x38] sm:$0xff]
    %v531 = vld [vmem:[#allocation10 + $0x40] sm:$0xff]
    %v532 = vld [vmem:[#allocation10 + $0x48] sm:$0xff]
    %v533 = vld [vmem:[#allocation10 + $0x50] sm:$0xff]
    %v534 = vld [vmem:[#allocation10 + $0x58] sm:$0xff]
    %v535 = vld [vmem:[#allocation10 + $0x60] sm:$0xff]
    %v536 = vld [vmem:[#allocation10 + $0x68] sm:$0xff]
    %v537 = vld [vmem:[#allocation10 + $0x70] sm:$0xff]
    %v538 = vld [vmem:[#allocation10 + $0x78] sm:$0xff]
    %v539 = vld [vmem:[%s8] sm:$0x3]
    %v541 = vlaneseq
    %v542 = vshrl.u32 %v541, 7
    %v543 = vsub.s32 0, %v542
    %v544 = vrot.slane %v539, %v543
    %v545 = vlaneseq
    %v546 = vshrl.u32 %v545, 7
    %v547 = vsub.s32 1, %v546
    %v548 = vrot.slane %v539, %v547
    %v567 = vunpack.c.l.b16 %v523
    %v568 = vunpack.c.h.b16 %v523
    %v569 = vunpack.c.l.b16 %v524
    %v570 = vunpack.c.h.b16 %v524
    %v571 = vunpack.c.l.b16 %v525
    %v572 = vunpack.c.h.b16 %v525
    %v573 = vunpack.c.l.b16 %v526
    %v574 = vunpack.c.h.b16 %v526
    %v575 = vunpack.c.l.b16 %v527
    %v576 = vunpack.c.h.b16 %v527
    %v577 = vunpack.c.l.b16 %v528
    %v578 = vunpack.c.h.b16 %v528
    %v579 = vunpack.c.l.b16 %v529
    %v580 = vunpack.c.h.b16 %v529
    %v581 = vunpack.c.l.b16 %v530
    %v582 = vunpack.c.h.b16 %v530
    %v583 = vunpack.c.l.b16 %v531
    %v584 = vunpack.c.h.b16 %v531
    %v585 = vunpack.c.l.b16 %v532
    %v586 = vunpack.c.h.b16 %v532
    %v587 = vunpack.c.l.b16 %v533
    %v588 = vunpack.c.h.b16 %v533
    %v589 = vunpack.c.l.b16 %v534
    %v590 = vunpack.c.h.b16 %v534
    %v591 = vunpack.c.l.b16 %v535
    %v592 = vunpack.c.h.b16 %v535
    %v593 = vunpack.c.l.b16 %v536
    %v594 = vunpack.c.h.b16 %v536
    %v595 = vunpack.c.l.b16 %v537
    %v596 = vunpack.c.h.b16 %v537
    %v597 = vunpack.c.l.b16 %v538
    %v598 = vunpack.c.h.b16 %v538
    %v599 = vpack.c.b16 %v569, %v567
    %v600 = vpack.c.b16 %v570, %v568
    %v601 = vpack.c.b16 %v573, %v571
    %v602 = vpack.c.b16 %v574, %v572
    %v603 = vpack.c.b16 %v577, %v575
    %v604 = vpack.c.b16 %v578, %v576
    %v605 = vpack.c.b16 %v581, %v579
    %v606 = vpack.c.b16 %v582, %v580
    %v607 = vpack.c.b16 %v585, %v583
    %v608 = vpack.c.b16 %v586, %v584
    %v609 = vpack.c.b16 %v589, %v587
    %v610 = vpack.c.b16 %v590, %v588
    %v611 = vpack.c.b16 %v593, %v591
    %v612 = vpack.c.b16 %v594, %v592
    %v613 = vpack.c.b16 %v597, %v595
    %v614 = vpack.c.b16 %v598, %v596
    %631 = vmatprep.subr.bf16.mxu0 %v614
    %632 = vmatpush1.bf16.msra.mxu0 %v613
    %633 = vmatprep.subr.bf16.mxu0 %v612
    %634 = vmatpush1.bf16.msra.mxu0 %v611
    %635 = vmatprep.subr.bf16.mxu0 %v610
    %636 = vmatpush1.bf16.msra.mxu0 %v609
    %637 = vmatprep.subr.bf16.mxu0 %v608
    %638 = vmatpush1.bf16.msra.mxu0 %v607
    %639 = vmatprep.subr.bf16.mxu0 %v606
    %640 = vmatpush1.bf16.msra.mxu0 %v605
    %641 = vmatprep.subr.bf16.mxu0 %v604
    %642 = vmatpush1.bf16.msra.mxu0 %v603
    %643 = vmatprep.subr.bf16.mxu0 %v602
    %644 = vmatpush1.bf16.msra.mxu0 %v601
    %645 = vmatprep.subr.bf16.mxu0 %v600
    %646 = vmatpush1.bf16.msra.mxu0 %v599
    %647 = vmatprep.subr.bf16.mxu0 0
    %648 = vmatpush2.bf16.msra.mxu0 0
    %649 = vmatprep.subr.bf16.mxu0 0
    %650 = vmatpush2.bf16.msra.mxu0 0
    %651 = vmatprep.subr.bf16.mxu0 0
    %652 = vmatpush2.bf16.msra.mxu0 0
    %653 = vmatprep.subr.bf16.mxu0 0
    %654 = vmatpush2.bf16.msra.mxu0 0
    %655 = vmatprep.subr.bf16.mxu0 0
    %656 = vmatpush2.bf16.msra.mxu0 0
    %657 = vmatprep.subr.bf16.mxu0 0
    %658 = vmatpush2.bf16.msra.mxu0 0
    %659 = vmatprep.subr.bf16.mxu0 0
    %660 = vmatpush2.bf16.msra.mxu0 0
    %661 = vmatprep.subr.bf16.mxu0 0
    %662 = vmatpush2.bf16.msra.mxu0 0
    %663 = vmatprep.mubr.bf16.mxu0 0
    %664 = vmatmul.mubr.bf16.gmra.mxu0 %v522
    %v665 = vpop.f32.mrf.mxu0
    %v666 = vadd.f32 %v544, %v665
    %v667 = vpop.f32.mrf.mxu0
    %v668 = vadd.f32 %v548, %v667
    %v669 = vpop.f32.mrf.mxu0
    %v670 = vadd.f32 %v544, %v669
    %v671 = vpop.f32.mrf.mxu0
    %v672 = vadd.f32 %v548, %v671
    %673 = vdwg.mxu0
    %v674 = vmax.f32 %v666, 0.0
    %v675 = vmax.f32 %v668, 0.0
    %v676 = vmax.f32 %v670, 0.0
    %v677 = vmax.f32 %v672, 0.0
    %678 = vst [vmem:[#allocation11] sm:$0xff] %v674
    %679 = vst [vmem:[#allocation11 + $0x8] sm:$0xff] %v675
    %680 = vst [vmem:[#allocation11 + $0x10] sm:$0xff] %v676
    %681 = vst [vmem:[#allocation11 + $0x18] sm:$0xff] %v677
    // Predicated region
    $region58: #{tpu_custom_call.1} parent=1 // pred_check
      _
    $region59: #{tpu_custom_call.1} parent=1 // pred_check_branch
      %683 = sbr.rel (0) target = $region61
    $region60: #{tpu_custom_call.1} parent=1 // pred_region
      %s685 = ssub.s32 512, 512
      %686 = vsyncadd [#allocation4], %s685
      %s687 = sshll.u32 [#allocation11], 4
      %s688 = int_to_ptr.vmem [resolvable:$true] %s687
      %693 = dma.vmem_to_hbm [thread:$0]  %s688, 512, %s9, [#allocation4], 256, 256, 16
    $region61: #{tpu_custom_call.1} parent=1 // pred_fallthru
      _
    // Predicated region
    $region62: #{tpu_custom_call.1} parent=1 // pred_check
      _
    $region63: #{tpu_custom_call.1} parent=1 // pred_check_branch
      %695 = sbr.rel (0) target = $region65
    $region64: #{tpu_custom_call.1} parent=1 // pred_region
      %696 = dma.done [#allocation4], 512
    $region65: #{tpu_custom_call.1} parent=1 // pred_fallthru
      _
    %697 = vsyncpa [#allocation3], 1
    %698 = vsyncpa [#allocation6], 1
    %699 = vsyncpa [#allocation9], 1
    %700 = vsyncpa [#allocation4], 1

</llo_original>
